<compile_context>
chip_gen: v6e
topology: v6e:2x2x1
jax: 0.10.0
libtpu: 0.0.40
codegen_flags: <defaults>
</compile_context>

<pallas_src>
import functools

import jax
import jax.numpy as jnp
import numpy as np
from jax.experimental import pallas as pl
from jax.experimental.pallas import tpu as pltpu


def _round_up(n, m):
    return ((n + m - 1) // m) * m


def _actor_kernel(x_ref,
                  w1_ref, p1_ref,
                  w2_ref, p2_ref,
                  w3_ref, b3_ref,
                  out_ref, *, inv_n1, inv_n2):
    """Fused fc1->LN->ReLU->fc2->LN->ReLU->mu->tanh for one batch tile."""
    eps = jnp.float32(1e-5)          # nn.LayerNorm default eps
    mm_dtype = w1_ref.dtype          # bf16 (default) or f32 MXU operands

    # Packed per-layer params: row 0 = linear bias, row 1 = LN gamma, row 2 = LN beta.
    b1, g1, be1 = p1_ref[0:1, :], p1_ref[1:2, :], p1_ref[2:3, :]
    b2, g2, be2 = p2_ref[0:1, :], p2_ref[1:2, :], p2_ref[2:3, :]

    # ---- fc1 -> LayerNorm -> ReLU --------------------------------------
    x = x_ref[...].astype(mm_dtype)
    h = jnp.dot(x, w1_ref[...], preferred_element_type=jnp.float32) + b1
    # Padded lanes of h are exactly 0 (zero weight cols / zero bias), so plain
    # sums over the padded width equal sums over the true feature count.
    s1 = jnp.sum(h, axis=-1, keepdims=True)
    s2 = jnp.sum(h * h, axis=-1, keepdims=True)
    m = s1 * jnp.float32(inv_n1)
    v = jnp.maximum(s2 * jnp.float32(inv_n1) - m * m, 0.0)
    h = (h - m) * jax.lax.rsqrt(v + eps) * g1 + be1
    h = jnp.maximum(h, 0.0)          # padded lanes stay 0 (gamma/beta pad = 0)

    # ---- fc2 -> LayerNorm -> ReLU --------------------------------------
    h = jnp.dot(h.astype(mm_dtype), w2_ref[...],
                preferred_element_type=jnp.float32) + b2
    s1 = jnp.sum(h, axis=-1, keepdims=True)
    s2 = jnp.sum(h * h, axis=-1, keepdims=True)
    m = s1 * jnp.float32(inv_n2)
    v = jnp.maximum(s2 * jnp.float32(inv_n2) - m * m, 0.0)
    h = (h - m) * jax.lax.rsqrt(v + eps) * g2 + be2
    h = jnp.maximum(h, 0.0)

    # ---- mu -> tanh (lane-dense 128-wide store; padded cols hold tanh(0)=0) -
    h = jnp.dot(h.astype(mm_dtype), w3_ref[...],
                preferred_element_type=jnp.float32) + b3_ref[...]
    out_ref[...] = jnp.tanh(h)


def prepare_actor_params(params, *, matmul_dtype=jnp.bfloat16):
    """Pad output-feature dims to lane multiples (128), cast MXU operands to
    bf16 by default, and pack each layer's tiny bias/LN vectors into a single
    sublane-aligned (8, d) block (fewer input DMAs per call).

    The input-feature dim of w1 is NOT padded: the x batch-tile uses its true
    feature count as the block's last dim, which is a legal BlockSpec shape.
    """
    in_dim, d1 = params["w1"].shape
    d2 = params["w2"].shape[1]
    d3 = params["w3"].shape[1]
    d1_p = _round_up(d1, 128)
    d2_p = _round_up(d2, 128)
    d3_p = _round_up(d3, 128)

    def pad_cols(a, cols):
        return jnp.pad(a, ((0, 0), (0, cols - a.shape[1])))

    def pad2(a, rows, cols):
        return jnp.pad(a, ((0, rows - a.shape[0]), (0, cols - a.shape[1])))

    def pack_ln(bias, gamma, beta, cols):
        blk = jnp.concatenate(
            [pad_cols(bias, cols), pad_cols(gamma, cols), pad_cols(beta, cols)],
            axis=0).astype(jnp.float32)                      # (3, cols)
        return jnp.pad(blk, ((0, 8 - blk.shape[0]), (0, 0)))  # (8, cols)

    prepped = {
        "w1": pad_cols(params["w1"], d1_p).astype(matmul_dtype),   # (in, d1_p)
        "p1": pack_ln(params["b1"], params["g1"], params["be1"], d1_p),
        "w2": pad2(params["w2"], d1_p, d2_p).astype(matmul_dtype),
        "p2": pack_ln(params["b2"], params["g2"], params["be2"], d2_p),
        "w3": pad2(params["w3"], d2_p, d3_p).astype(matmul_dtype),
        "b3": pad_cols(params["b3"], d3_p).astype(jnp.float32),
    }
    dims = dict(input_dims=in_dim, fc1_dims=d1, fc2_dims=d2, n_actions=d3,
                d1_pad=d1_p, d2_pad=d2_p, d3_pad=d3_p)
    return prepped, dims


def _choose_batch_tile(B, block_b):
    """Sublane-aligned batch tile; prefer an even number (>= 2) of grid steps
    when B allows it so the "parallel" batch axis splits evenly across v7x's
    two TensorCores (a grid of (1,) would leave one TC idle)."""
    tb = _round_up(min(block_b, max(B, 1)), 8)
    steps = pl.cdiv(B, tb)
    if B > 8 and steps % 2 == 1:
        tb = _round_up(pl.cdiv(B, steps + 1), 8)
        steps = pl.cdiv(B, tb)
    b_pad = tb * steps
    return tb, b_pad, steps


def actor_forward(state, prepped, dims, *, block_b=128):
    """state: [B, ...] (e.g. NCHW). Returns tanh(mu(...)), squeezed like torch.

    block_b: rows per batch tile. 128 is the right choice on v5e; sweep
    {128, 256, 512} on v6e/v7x for large batches (the resident footprint is
    < ~3 MiB, so VMEM is nowhere near the limit — the kernel is grid-step /
    DMA-overhead bound at RL batch sizes).
    """
    B = state.shape[0]
    x = state.reshape(B, -1).astype(jnp.float32)   # nn.Flatten (row-major)
    in_dim = dims["input_dims"]
    assert x.shape[1] == in_dim, "state does not flatten to input_dims"

    tb, b_pad, steps = _choose_batch_tile(B, block_b)
    if b_pad != B:
        x = jnp.pad(x, ((0, b_pad - B), (0, 0)))

    d3_p = dims["d3_pad"]

    def resident(shape):
        # Constant index_map -> block stays VMEM-resident across grid steps.
        # (pipeline_mode=pl.Buffered(1) would halve its buffer count; skipped
        #  since the total VMEM footprint is already far under the scoped limit.)
        return pl.BlockSpec(shape, lambda i: (0, 0))

    kernel = functools.partial(
        _actor_kernel,
        inv_n1=1.0 / dims["fc1_dims"],
        inv_n2=1.0 / dims["fc2_dims"],
    )

    param_order = ("w1", "p1", "w2", "p2", "w3", "b3")
    flops = 2 * b_pad * (in_dim * dims["d1_pad"]
                         + dims["d1_pad"] * dims["d2_pad"]
                         + dims["d2_pad"] * d3_p)
    bytes_accessed = (
        x.size * x.dtype.itemsize
        + sum(prepped[k].size * prepped[k].dtype.itemsize for k in param_order)
        + b_pad * d3_p * 4)
    transcendentals = b_pad * (2 + d3_p)   # 2 rsqrt per row + tanh per out elem

    out = pl.pallas_call(
        kernel,
        out_shape=jax.ShapeDtypeStruct((b_pad, d3_p), jnp.float32),
        grid=(steps,),
        in_specs=[pl.BlockSpec((tb, in_dim), lambda i: (i, 0))]
                 + [resident(prepped[k].shape) for k in param_order],
        out_specs=pl.BlockSpec((tb, d3_p), lambda i: (i, 0)),
        compiler_params=pltpu.CompilerParams(
            dimension_semantics=("parallel",)),
        cost_estimate=pl.CostEstimate(
            flops=flops,
            transcendentals=transcendentals,
            bytes_accessed=bytes_accessed),
    )(x, *[prepped[k] for k in param_order])

    # Matches torch .squeeze(): drops ALL size-1 dims (incl. batch when B==1).
    return jnp.squeeze(out[:B, :dims["n_actions"]])


def init_actor_params(key, input_dims, n_actions, fc1_dims=400, fc2_dims=300):
    """Deterministic init mirroring ActorNetwork.__init__ (uniform ranges)."""
    ks = jax.random.split(key, 6)
    # NOTE: original code uses weight.size()[0] == out_features for the bound.
    f1 = 1.0 / np.sqrt(fc1_dims)
    f2 = 1.0 / np.sqrt(fc2_dims)
    f3 = 0.003

    def unif(k, shape, b):
        return jax.random.uniform(k, shape, jnp.float32, minval=-b, maxval=b)

    return {
        # weights stored transposed: [in, out]
        "w1": unif(ks[0], (input_dims, fc1_dims), f1),
        "b1": unif(ks[1], (1, fc1_dims), f1),
        "g1": jnp.ones((1, fc1_dims), jnp.float32),    # LayerNorm weight
        "be1": jnp.zeros((1, fc1_dims), jnp.float32),  # LayerNorm bias
        "w2": unif(ks[2], (fc1_dims, fc2_dims), f2),
        "b2": unif(ks[3], (1, fc2_dims), f2),
        "g2": jnp.ones((1, fc2_dims), jnp.float32),
        "be2": jnp.zeros((1, fc2_dims), jnp.float32),
        "w3": unif(ks[4], (fc2_dims, n_actions), f3),
        "b3": unif(ks[5], (1, n_actions), f3),
    }


def actor_forward_ref(state, params):
    """Pure-JAX reference (unpadded f32 params) for correctness checking."""
    B = state.shape[0]
    x = state.reshape(B, -1).astype(jnp.float32)

    def ln(h, g, b):
        m = jnp.mean(h, axis=-1, keepdims=True)
        v = jnp.mean((h - m) ** 2, axis=-1, keepdims=True)
        return (h - m) / jnp.sqrt(v + 1e-5) * g + b

    h = x @ params["w1"] + params["b1"]
    h = jax.nn.relu(ln(h, params["g1"], params["be1"]))
    h = h @ params["w2"] + params["b2"]
    h = jax.nn.relu(ln(h, params["g2"], params["be2"]))
    h = jnp.tanh(h @ params["w3"] + params["b3"])
    return jnp.squeeze(h)


# TODO(synk): save_checkpoint / load_checkpoint are file I/O and not part of
# the forward pass; intentionally not implemented here.


if __name__ == "__main__":
    key = jax.random.PRNGKey(0)
    k_state, k_state2, k_params = jax.random.split(key, 3)

    # Small, forward-consistent shapes: state [B=2, C=4, H=4, W=4] -> input_dims=64
    B, C, H, W = 2, 4, 4, 4
    input_dims = C * H * W
    n_actions = 8

    params = init_actor_params(k_params, input_dims, n_actions,
                               fc1_dims=400, fc2_dims=300)
    state = jax.random.normal(k_state, (B, C, H, W), jnp.float32)
    ref = actor_forward_ref(state, params)

    # --- bf16 MXU operands (default shipping path), tiny batch ------------
    prepped, dims = prepare_actor_params(params)          # bf16 by default
    out = jax.block_until_ready(actor_forward(state, prepped, dims))
    np.testing.assert_allclose(np.asarray(out), np.asarray(ref),
                               rtol=0.0, atol=5e-2)
    assert out.shape == (B, n_actions)

    # --- bf16, larger batch: block_b=256 request -> even grid (2 x 128) ----
    B2 = 256
    state2 = jax.random.normal(k_state2, (B2, C, H, W), jnp.float32)
    ref2 = actor_forward_ref(state2, params)
    out2 = jax.block_until_ready(
        actor_forward(state2, prepped, dims, block_b=256))
    np.testing.assert_allclose(np.asarray(out2), np.asarray(ref2),
                               rtol=0.0, atol=5e-2)
    assert out2.shape == (B2, n_actions)

    # --- f32 MXU operands (debug path) with tight tolerances ---------------
    prepped_f32, dims_f = prepare_actor_params(params, matmul_dtype=jnp.float32)
    out_f32 = jax.block_until_ready(
        actor_forward(state2, prepped_f32, dims_f, block_b=128))
    np.testing.assert_allclose(np.asarray(out_f32), np.asarray(ref2),
                               rtol=1e-4, atol=1e-5)

    print("KERNEL_OK")
</pallas_src>

<mosaic_0001>
module attributes {stable_mosaic.version = 11 : i64} {
  func.func @_actor_kernel(%arg0: i32, %arg1: memref<8x64xf32, #tpu.memory_space<vmem>>, %arg2: memref<64x512xbf16, #tpu.memory_space<vmem>>, %arg3: memref<8x512xf32, #tpu.memory_space<vmem>>, %arg4: memref<512x384xbf16, #tpu.memory_space<vmem>>, %arg5: memref<8x384xf32, #tpu.memory_space<vmem>>, %arg6: memref<384x128xbf16, #tpu.memory_space<vmem>>, %arg7: memref<1x128xf32, #tpu.memory_space<vmem>>, %arg8: memref<8x128xf32, #tpu.memory_space<vmem>>) attributes {dimension_semantics = [#tpu.dimension_semantics<parallel>], iteration_bounds = array<i64: 1>, scalar_prefetch = 0 : i64, scratch_operands = 0 : i64, tpu.core_type = #tpu.core_type<tc>, window_params = [{transform_indices = @transform_0, window_bounds = array<i64: 8, 64>}, {pipeline_mode = #tpu.pipeline_mode<synchronous>, transform_indices = @transform_1, window_bounds = array<i64: 64, 512>}, {pipeline_mode = #tpu.pipeline_mode<synchronous>, transform_indices = @transform_2, window_bounds = array<i64: 8, 512>}, {pipeline_mode = #tpu.pipeline_mode<synchronous>, transform_indices = @transform_3, window_bounds = array<i64: 512, 384>}, {pipeline_mode = #tpu.pipeline_mode<synchronous>, transform_indices = @transform_4, window_bounds = array<i64: 8, 384>}, {pipeline_mode = #tpu.pipeline_mode<synchronous>, transform_indices = @transform_5, window_bounds = array<i64: 384, 128>}, {pipeline_mode = #tpu.pipeline_mode<synchronous>, transform_indices = @transform_6, window_bounds = array<i64: 1, 128>}, {transform_indices = @transform_7, window_bounds = array<i64: 8, 128>}]} {
    %c0 = arith.constant 0 : index
    %c0_0 = arith.constant 0 : index
    %0 = vector.load %arg3[%c0, %c0_0] : memref<8x512xf32, #tpu.memory_space<vmem>>, vector<1x512xf32>
    %c1 = arith.constant 1 : index
    %c0_1 = arith.constant 0 : index
    %1 = vector.load %arg3[%c1, %c0_1] : memref<8x512xf32, #tpu.memory_space<vmem>>, vector<1x512xf32>
    %c2 = arith.constant 2 : index
    %c0_2 = arith.constant 0 : index
    %2 = vector.load %arg3[%c2, %c0_2] : memref<8x512xf32, #tpu.memory_space<vmem>>, vector<1x512xf32>
    %c0_3 = arith.constant 0 : index
    %c0_4 = arith.constant 0 : index
    %3 = vector.load %arg5[%c0_3, %c0_4] : memref<8x384xf32, #tpu.memory_space<vmem>>, vector<1x384xf32>
    %c1_5 = arith.constant 1 : index
    %c0_6 = arith.constant 0 : index
    %4 = vector.load %arg5[%c1_5, %c0_6] : memref<8x384xf32, #tpu.memory_space<vmem>>, vector<1x384xf32>
    %c2_7 = arith.constant 2 : index
    %c0_8 = arith.constant 0 : index
    %5 = vector.load %arg5[%c2_7, %c0_8] : memref<8x384xf32, #tpu.memory_space<vmem>>, vector<1x384xf32>
    %c0_9 = arith.constant 0 : index
    %c0_10 = arith.constant 0 : index
    %6 = vector.load %arg1[%c0_9, %c0_10] : memref<8x64xf32, #tpu.memory_space<vmem>>, vector<8x64xf32>
    %7 = arith.truncf %6 : vector<8x64xf32> to vector<8x64xbf16>
    %c0_11 = arith.constant 0 : index
    %c0_12 = arith.constant 0 : index
    %8 = vector.load %arg2[%c0_11, %c0_12] : memref<64x512xbf16, #tpu.memory_space<vmem>>, vector<64x512xbf16>
    %cst = arith.constant dense<0.000000e+00> : vector<8x512xf32>
    %9 = tpu.matmul %7, %8, %cst {dimension_numbers = #tpu.dot_dimension_numbers<[1], [0], [0], [1], [0, 0, 1, 1], [], []>} : vector<8x64xbf16>, vector<64x512xbf16>, vector<8x512xf32> -> vector<8x512xf32>
    %10 = vector.broadcast %0 : vector<1x512xf32> to vector<8x512xf32>
    %11 = arith.addf %9, %10 : vector<8x512xf32>
    %cst_13 = arith.constant dense<0.000000e+00> : vector<8xf32>
    %12 = vector.multi_reduction <add>, %11, %cst_13 [1] : vector<8x512xf32> to vector<8xf32>
    %13 = vector.shape_cast %12 : vector<8xf32> to vector<8x1xf32>
    %14 = arith.mulf %11, %11 : vector<8x512xf32>
    %cst_14 = arith.constant dense<0.000000e+00> : vector<8xf32>
    %15 = vector.multi_reduction <add>, %14, %cst_14 [1] : vector<8x512xf32> to vector<8xf32>
    %16 = vector.shape_cast %15 : vector<8xf32> to vector<8x1xf32>
    %cst_15 = arith.constant 2.500000e-03 : f32
    %17 = vector.broadcast %cst_15 : f32 to vector<8x1xf32>
    %18 = arith.mulf %13, %17 : vector<8x1xf32>
    %cst_16 = arith.constant 2.500000e-03 : f32
    %19 = vector.broadcast %cst_16 : f32 to vector<8x1xf32>
    %20 = arith.mulf %16, %19 : vector<8x1xf32>
    %21 = arith.mulf %18, %18 : vector<8x1xf32>
    %22 = arith.subf %20, %21 : vector<8x1xf32>
    %cst_17 = arith.constant 0.000000e+00 : f32
    %23 = vector.broadcast %cst_17 : f32 to vector<8x1xf32>
    %24 = arith.maximumf %22, %23 : vector<8x1xf32>
    %25 = vector.broadcast %18 : vector<8x1xf32> to vector<8x512xf32>
    %26 = arith.subf %11, %25 : vector<8x512xf32>
    %cst_18 = arith.constant 9.99999974E-6 : f32
    %27 = vector.broadcast %cst_18 : f32 to vector<8x1xf32>
    %28 = arith.addf %24, %27 : vector<8x1xf32>
    %29 = math.rsqrt %28 : vector<8x1xf32>
    %30 = vector.broadcast %29 : vector<8x1xf32> to vector<8x512xf32>
    %31 = arith.mulf %26, %30 : vector<8x512xf32>
    %32 = vector.broadcast %1 : vector<1x512xf32> to vector<8x512xf32>
    %33 = arith.mulf %31, %32 : vector<8x512xf32>
    %34 = vector.broadcast %2 : vector<1x512xf32> to vector<8x512xf32>
    %35 = arith.addf %33, %34 : vector<8x512xf32>
    %cst_19 = arith.constant 0.000000e+00 : f32
    %36 = vector.broadcast %cst_19 : f32 to vector<8x512xf32>
    %37 = arith.maximumf %35, %36 : vector<8x512xf32>
    %38 = arith.truncf %37 : vector<8x512xf32> to vector<8x512xbf16>
    %c0_20 = arith.constant 0 : index
    %c0_21 = arith.constant 0 : index
    %39 = vector.load %arg4[%c0_20, %c0_21] : memref<512x384xbf16, #tpu.memory_space<vmem>>, vector<512x384xbf16>
    %cst_22 = arith.constant dense<0.000000e+00> : vector<8x384xf32>
    %40 = tpu.matmul %38, %39, %cst_22 {dimension_numbers = #tpu.dot_dimension_numbers<[1], [0], [0], [1], [0, 0, 1, 1], [], []>} : vector<8x512xbf16>, vector<512x384xbf16>, vector<8x384xf32> -> vector<8x384xf32>
    %41 = vector.broadcast %3 : vector<1x384xf32> to vector<8x384xf32>
    %42 = arith.addf %40, %41 : vector<8x384xf32>
    %cst_23 = arith.constant dense<0.000000e+00> : vector<8xf32>
    %43 = vector.multi_reduction <add>, %42, %cst_23 [1] : vector<8x384xf32> to vector<8xf32>
    %44 = vector.shape_cast %43 : vector<8xf32> to vector<8x1xf32>
    %45 = arith.mulf %42, %42 : vector<8x384xf32>
    %cst_24 = arith.constant dense<0.000000e+00> : vector<8xf32>
    %46 = vector.multi_reduction <add>, %45, %cst_24 [1] : vector<8x384xf32> to vector<8xf32>
    %47 = vector.shape_cast %46 : vector<8xf32> to vector<8x1xf32>
    %cst_25 = arith.constant 0.00333333341 : f32
    %48 = vector.broadcast %cst_25 : f32 to vector<8x1xf32>
    %49 = arith.mulf %44, %48 : vector<8x1xf32>
    %cst_26 = arith.constant 0.00333333341 : f32
    %50 = vector.broadcast %cst_26 : f32 to vector<8x1xf32>
    %51 = arith.mulf %47, %50 : vector<8x1xf32>
    %52 = arith.mulf %49, %49 : vector<8x1xf32>
    %53 = arith.subf %51, %52 : vector<8x1xf32>
    %cst_27 = arith.constant 0.000000e+00 : f32
    %54 = vector.broadcast %cst_27 : f32 to vector<8x1xf32>
    %55 = arith.maximumf %53, %54 : vector<8x1xf32>
    %56 = vector.broadcast %49 : vector<8x1xf32> to vector<8x384xf32>
    %57 = arith.subf %42, %56 : vector<8x384xf32>
    %cst_28 = arith.constant 9.99999974E-6 : f32
    %58 = vector.broadcast %cst_28 : f32 to vector<8x1xf32>
    %59 = arith.addf %55, %58 : vector<8x1xf32>
    %60 = math.rsqrt %59 : vector<8x1xf32>
    %61 = vector.broadcast %60 : vector<8x1xf32> to vector<8x384xf32>
    %62 = arith.mulf %57, %61 : vector<8x384xf32>
    %63 = vector.broadcast %4 : vector<1x384xf32> to vector<8x384xf32>
    %64 = arith.mulf %62, %63 : vector<8x384xf32>
    %65 = vector.broadcast %5 : vector<1x384xf32> to vector<8x384xf32>
    %66 = arith.addf %64, %65 : vector<8x384xf32>
    %cst_29 = arith.constant 0.000000e+00 : f32
    %67 = vector.broadcast %cst_29 : f32 to vector<8x384xf32>
    %68 = arith.maximumf %66, %67 : vector<8x384xf32>
    %69 = arith.truncf %68 : vector<8x384xf32> to vector<8x384xbf16>
    %c0_30 = arith.constant 0 : index
    %c0_31 = arith.constant 0 : index
    %70 = vector.load %arg6[%c0_30, %c0_31] : memref<384x128xbf16, #tpu.memory_space<vmem>>, vector<384x128xbf16>
    %cst_32 = arith.constant dense<0.000000e+00> : vector<8x128xf32>
    %71 = tpu.matmul %69, %70, %cst_32 {dimension_numbers = #tpu.dot_dimension_numbers<[1], [0], [0], [1], [0, 0, 1, 1], [], []>} : vector<8x384xbf16>, vector<384x128xbf16>, vector<8x128xf32> -> vector<8x128xf32>
    %c0_33 = arith.constant 0 : index
    %c0_34 = arith.constant 0 : index
    %72 = vector.load %arg7[%c0_33, %c0_34] : memref<1x128xf32, #tpu.memory_space<vmem>>, vector<1x128xf32>
    %73 = vector.broadcast %72 : vector<1x128xf32> to vector<8x128xf32>
    %74 = arith.addf %71, %73 : vector<8x128xf32>
    %75 = math.tanh %74 : vector<8x128xf32>
    %c0_35 = arith.constant 0 : index
    %c0_36 = arith.constant 0 : index
    %76 = vector.load %arg8[%c0_35, %c0_36] : memref<8x128xf32, #tpu.memory_space<vmem>>, vector<8x128xf32>
    tpu.vector_store %arg8[%c0_35, %c0_36], %75 {strides = array<i32>} : memref<8x128xf32, #tpu.memory_space<vmem>>, vector<8x128xf32>,
    return
  }
  func.func @transform_0(%arg0: i32) -> (i32, i32) {
    %c0_i32 = arith.constant 0 : i32
    %c0_i32_0 = arith.constant 0 : i32
    return %arg0, %c0_i32 : i32, i32
  }
  func.func @transform_1(%arg0: i32) -> (i32, i32) {
    %c0_i32 = arith.constant 0 : i32
    %c0_i32_0 = arith.constant 0 : i32
    %c0_i32_1 = arith.constant 0 : i32
    return %c0_i32, %c0_i32_0 : i32, i32
  }
  func.func @transform_2(%arg0: i32) -> (i32, i32) {
    %c0_i32 = arith.constant 0 : i32
    %c0_i32_0 = arith.constant 0 : i32
    %c0_i32_1 = arith.constant 0 : i32
    return %c0_i32, %c0_i32_0 : i32, i32
  }
  func.func @transform_3(%arg0: i32) -> (i32, i32) {
    %c0_i32 = arith.constant 0 : i32
    %c0_i32_0 = arith.constant 0 : i32
    %c0_i32_1 = arith.constant 0 : i32
    return %c0_i32, %c0_i32_0 : i32, i32
  }
  func.func @transform_4(%arg0: i32) -> (i32, i32) {
    %c0_i32 = arith.constant 0 : i32
    %c0_i32_0 = arith.constant 0 : i32
    %c0_i32_1 = arith.constant 0 : i32
    return %c0_i32, %c0_i32_0 : i32, i32
  }
  func.func @transform_5(%arg0: i32) -> (i32, i32) {
    %c0_i32 = arith.constant 0 : i32
    %c0_i32_0 = arith.constant 0 : i32
    %c0_i32_1 = arith.constant 0 : i32
    return %c0_i32, %c0_i32_0 : i32, i32
  }
  func.func @transform_6(%arg0: i32) -> (i32, i32) {
    %c0_i32 = arith.constant 0 : i32
    %c0_i32_0 = arith.constant 0 : i32
    %c0_i32_1 = arith.constant 0 : i32
    return %c0_i32, %c0_i32_0 : i32, i32
  }
  func.func @transform_7(%arg0: i32) -> (i32, i32) {
    %c0_i32 = arith.constant 0 : i32
    %c0_i32_0 = arith.constant 0 : i32
    return %arg0, %c0_i32 : i32, i32
  }
}

</mosaic_0001>

<llo_original>
// kernel: tpu_custom_call.1
$region0: #{tpu_custom_call.1}
  #allocation0 [shape = 'u32[]', space=smem, size = 0x4, offset = 0x4, fixed_abs, tag = 'smem constant byte address 0x4 - core index']
  #allocation1 [shape = 'u32[144,128]{1,0:T(1,128)}', space=vmem, size = 0x12000, scoped, tag = 'internal scratch']
  %s0 = inlined_call_operand.hbm [shape: f32[8,64], index: 0, kind: input, shape index: {}]
  %s1 = inlined_call_operand.hbm [shape: bf16[64,512], index: 1, kind: input, shape index: {}]
  %s2 = inlined_call_operand.hbm [shape: f32[8,512], index: 2, kind: input, shape index: {}]
  %s3 = inlined_call_operand.hbm [shape: bf16[512,384], index: 3, kind: input, shape index: {}]
  %s4 = inlined_call_operand.hbm [shape: f32[8,384], index: 4, kind: input, shape index: {}]
  %s5 = inlined_call_operand.hbm [shape: bf16[384,128], index: 5, kind: input, shape index: {}]
  %s6 = inlined_call_operand.vmem [shape: f32[1,128], index: 6, kind: input, shape index: {}]
  %s7 = inlined_call_operand.hbm [shape: f32[8,128], index: 7, kind: output, shape index: {}]
  %s8 = sld [smem:[#allocation0]]
  $region62: #{tpu_custom_call.1} parent=0
    _
  %s10 = ssub.s32 1, %s8
  %s11 = scalar_select 0, %s10, %s8
  $region1: #{tpu_custom_call.1} parent=0
    #allocation2 [shape = 'u8[4096]{0}', space=vmem, size = 0x1000, scoped, tag = 'input window, operand 0, single buffered']
    #allocation3 [shape = 's32[1]{0}', space=sflag, size = 0x4, scoped, tag = 'scoped memory for tpu_custom_call.1']
    #allocation4 [shape = 's32[1]{0}', space=sflag, size = 0x4, scoped, tag = 'scoped memory for tpu_custom_call.1']
    #allocation5 [shape = 'u8[65536]{0}', space=vmem, size = 0x10000, scoped, tag = 'input window, operand 1, single buffered']
    #allocation6 [shape = 's32[1]{0}', space=sflag, size = 0x4, scoped, tag = 'scoped memory for tpu_custom_call.1']
    #allocation7 [shape = 'u8[16384]{0}', space=vmem, size = 0x4000, scoped, tag = 'input window, operand 2, single buffered']
    #allocation8 [shape = 'u8[393216]{0}', space=vmem, size = 0x60000, scoped, tag = 'input window, operand 3, single buffered']
    #allocation9 [shape = 's32[1]{0}', space=sflag, size = 0x4, scoped, tag = 'scoped memory for tpu_custom_call.1']
    #allocation10 [shape = 'u8[12288]{0}', space=vmem, size = 0x3000, scoped, tag = 'input window, operand 4, single buffered']
    #allocation11 [shape = 'u8[98304]{0}', space=vmem, size = 0x18000, scoped, tag = 'input window, operand 5, single buffered']
    #allocation12 [shape = 's32[1]{0}', space=sflag, size = 0x4, scoped, tag = 'scoped memory for tpu_custom_call.1']
    #allocation13 [shape = 'u8[4096]{0}', space=vmem, size = 0x1000, scoped, tag = 'output window, operand 0, single buffered']
    %12 = vsyncpa [#allocation3], 0
    %13 = vsyncpa [#allocation6], 0
    %14 = vsyncpa [#allocation9], 0
    %15 = vsyncpa [#allocation12], 0
    %16 = vsyncpa [#allocation4], 0
    // Predicated region
    $region2: #{tpu_custom_call.1} parent=1 // pred_check
      _
    $region3: #{tpu_custom_call.1} parent=1 // pred_check_branch
      %18 = sbr.rel (0) target = $region5
    $region4: #{tpu_custom_call.1} parent=1 // pred_region
      %s20 = ssub.s32 128, 128
      %21 = vsyncadd [#allocation3], %s20
      %s23 = sshll.u32 [#allocation2], 4
      %s24 = int_to_ptr.vmem [resolvable:$true] %s23
      %26 = dma.hbm_to_vmem [thread:$0]  %s0, 128, %s24, [#allocation3]
    $region5: #{tpu_custom_call.1} parent=1 // pred_fallthru
      _
    // Predicated region
    $region6: #{tpu_custom_call.1} parent=1 // pred_check
      _
    $region7: #{tpu_custom_call.1} parent=1 // pred_check_branch
      %28 = sbr.rel (0) target = $region9
    $region8: #{tpu_custom_call.1} parent=1 // pred_region
      %s30 = ssub.s32 2048, 2048
      %31 = vsyncadd [#allocation6], %s30
      %s32 = sshll.u32 [#allocation5], 4
      %s33 = int_to_ptr.vmem [resolvable:$true] %s32
      %38 = dma.hbm_to_vmem [thread:$0]  %s1, 2048, %s33, [#allocation6], 256, 256, 16
    $region9: #{tpu_custom_call.1} parent=1 // pred_fallthru
      _
    // Predicated region
    $region10: #{tpu_custom_call.1} parent=1 // pred_check
      _
    $region11: #{tpu_custom_call.1} parent=1 // pred_check_branch
      %40 = sbr.rel (0) target = $region13
    $region12: #{tpu_custom_call.1} parent=1 // pred_region
      %s42 = ssub.s32 512, 512
      %43 = vsyncadd [#allocation6], %s42
      %s45 = sshll.u32 [#allocation7], 4
      %s46 = int_to_ptr.vmem [resolvable:$true] %s45
      %48 = dma.hbm_to_vmem [thread:$0]  %s2, 512, %s46, [#allocation6]
    $region13: #{tpu_custom_call.1} parent=1 // pred_fallthru
      _
    // Predicated region
    $region14: #{tpu_custom_call.1} parent=1 // pred_check
      _
    $region15: #{tpu_custom_call.1} parent=1 // pred_check_branch
      %50 = sbr.rel (0) target = $region17
    $region16: #{tpu_custom_call.1} parent=1 // pred_region
      %s52 = ssub.s32 12288, 12288
      %53 = vsyncadd [#allocation9], %s52
      %s54 = sshll.u32 [#allocation8], 4
      %s55 = int_to_ptr.vmem [resolvable:$true] %s54
      %60 = dma.hbm_to_vmem [thread:$0]  %s3, 12288, %s55, [#allocation9], 192, 192, 12
    $region17: #{tpu_custom_call.1} parent=1 // pred_fallthru
      _
    // Predicated region
    $region18: #{tpu_custom_call.1} parent=1 // pred_check
      _
    $region19: #{tpu_custom_call.1} parent=1 // pred_check_branch
      %62 = sbr.rel (0) target = $region21
    $region20: #{tpu_custom_call.1} parent=1 // pred_region
      %s64 = ssub.s32 384, 384
      %65 = vsyncadd [#allocation9], %s64
      %s67 = sshll.u32 [#allocation10], 4
      %s68 = int_to_ptr.vmem [resolvable:$true] %s67
      %70 = dma.hbm_to_vmem [thread:$0]  %s4, 384, %s68, [#allocation9]
    $region21: #{tpu_custom_call.1} parent=1 // pred_fallthru
      _
    // Predicated region
    $region22: #{tpu_custom_call.1} parent=1 // pred_check
      _
    $region23: #{tpu_custom_call.1} parent=1 // pred_check_branch
      %72 = sbr.rel (0) target = $region25
    $region24: #{tpu_custom_call.1} parent=1 // pred_region
      %s74 = ssub.s32 3072, 3072
      %75 = vsyncadd [#allocation12], %s74
      %s76 = sshll.u32 [#allocation11], 4
      %s77 = int_to_ptr.vmem [resolvable:$true] %s76
      %82 = dma.hbm_to_vmem [thread:$0]  %s5, 3072, %s77, [#allocation12], 64, 64, 4
    $region25: #{tpu_custom_call.1} parent=1 // pred_fallthru
      _
    // Predicated region
    $region26: #{tpu_custom_call.1} parent=1 // pred_check
      _
    $region27: #{tpu_custom_call.1} parent=1 // pred_check_branch
      %84 = sbr.rel (0) target = $region29
    $region28: #{tpu_custom_call.1} parent=1 // pred_region
      _
    $region29: #{tpu_custom_call.1} parent=1 // pred_fallthru
      _
    // Predicated region
    $region30: #{tpu_custom_call.1} parent=1 // pred_check
      _
    $region31: #{tpu_custom_call.1} parent=1 // pred_check_branch
      %86 = sbr.rel (0) target = $region33
    $region32: #{tpu_custom_call.1} parent=1 // pred_region
      %87 = dma.done [#allocation3], 128
    $region33: #{tpu_custom_call.1} parent=1 // pred_fallthru
      _
    // Predicated region
    $region34: #{tpu_custom_call.1} parent=1 // pred_check
      _
    $region35: #{tpu_custom_call.1} parent=1 // pred_check_branch
      %89 = sbr.rel (0) target = $region37
    $region36: #{tpu_custom_call.1} parent=1 // pred_region
      %90 = dma.done [#allocation6], 2048
    $region37: #{tpu_custom_call.1} parent=1 // pred_fallthru
      _
    // Predicated region
    $region38: #{tpu_custom_call.1} parent=1 // pred_check
      _
    $region39: #{tpu_custom_call.1} parent=1 // pred_check_branch
      %92 = sbr.rel (0) target = $region41
    $region40: #{tpu_custom_call.1} parent=1 // pred_region
      %93 = dma.done [#allocation6], 512
    $region41: #{tpu_custom_call.1} parent=1 // pred_fallthru
      _
    // Predicated region
    $region42: #{tpu_custom_call.1} parent=1 // pred_check
      _
    $region43: #{tpu_custom_call.1} parent=1 // pred_check_branch
      %95 = sbr.rel (0) target = $region45
    $region44: #{tpu_custom_call.1} parent=1 // pred_region
      %96 = dma.done [#allocation9], 12288
    $region45: #{tpu_custom_call.1} parent=1 // pred_fallthru
      _
    // Predicated region
    $region46: #{tpu_custom_call.1} parent=1 // pred_check
      _
    $region47: #{tpu_custom_call.1} parent=1 // pred_check_branch
      %98 = sbr.rel (0) target = $region49
    $region48: #{tpu_custom_call.1} parent=1 // pred_region
      %99 = dma.done [#allocation9], 384
    $region49: #{tpu_custom_call.1} parent=1 // pred_fallthru
      _
    // Predicated region
    $region50: #{tpu_custom_call.1} parent=1 // pred_check
      _
    $region51: #{tpu_custom_call.1} parent=1 // pred_check_branch
      %101 = sbr.rel (0) target = $region53
    $region52: #{tpu_custom_call.1} parent=1 // pred_region
      %102 = dma.done [#allocation12], 3072
    $region53: #{tpu_custom_call.1} parent=1 // pred_fallthru
      _
    %v104 = vld [vmem:[#allocation7] ss:$8 sm:$0xf]
    %s105 = scalar_lea.vmem [#allocation7], 1
    %v106 = vld [vmem:[%s105] ss:$8 sm:$0xf]
    %s107 = scalar_lea.vmem [#allocation7], 2
    %v108 = vld [vmem:[%s107] ss:$8 sm:$0xf]
    %v109 = vld [vmem:[#allocation10] ss:$8 sm:$0x7]
    %s110 = scalar_lea.vmem [#allocation10], 1
    %v111 = vld [vmem:[%s110] ss:$8 sm:$0x7]
    %s112 = scalar_lea.vmem [#allocation10], 2
    %v113 = vld [vmem:[%s112] ss:$8 sm:$0x7]
    %v114 = vld [vmem:[#allocation2] sm:$0xff]
    %v115 = vpack.c.bf16 %v114, %v114
    %v116 = vld [vmem:[#allocation5] sm:$0xff]
    %v117 = vld [vmem:[#allocation5 + $0x8] sm:$0xff]
    %v118 = vld [vmem:[#allocation5 + $0x10] sm:$0xff]
    %v119 = vld [vmem:[#allocation5 + $0x18] sm:$0xff]
    %v120 = vld [vmem:[#allocation5 + $0x20] sm:$0xff]
    %v121 = vld [vmem:[#allocation5 + $0x28] sm:$0xff]
    %v122 = vld [vmem:[#allocation5 + $0x30] sm:$0xff]
    %v123 = vld [vmem:[#allocation5 + $0x38] sm:$0xff]
    %v124 = vld [vmem:[#allocation5 + $0x40] sm:$0xff]
    %v125 = vld [vmem:[#allocation5 + $0x48] sm:$0xff]
    %v126 = vld [vmem:[#allocation5 + $0x50] sm:$0xff]
    %v127 = vld [vmem:[#allocation5 + $0x58] sm:$0xff]
    %v128 = vld [vmem:[#allocation5 + $0x60] sm:$0xff]
    %v129 = vld [vmem:[#allocation5 + $0x68] sm:$0xff]
    %v130 = vld [vmem:[#allocation5 + $0x70] sm:$0xff]
    %v131 = vld [vmem:[#allocation5 + $0x78] sm:$0xff]
    %v133 = vlaneseq
    %v134 = vshrl.u32 %v133, 7
    %v135 = vsub.s32 0, %v134
    %v136 = vrot.slane %v104, %v135
    %v137 = vlaneseq
    %v138 = vshrl.u32 %v137, 7
    %v139 = vsub.s32 1, %v138
    %v140 = vrot.slane %v104, %v139
    %v141 = vlaneseq
    %v142 = vshrl.u32 %v141, 7
    %v143 = vsub.s32 2, %v142
    %v144 = vrot.slane %v104, %v143
    %v145 = vlaneseq
    %v146 = vshrl.u32 %v145, 7
    %v147 = vsub.s32 3, %v146
    %v148 = vrot.slane %v104, %v147
    %v169 = vunpack.c.l.b16 %v116
    %v170 = vunpack.c.h.b16 %v116
    %v171 = vunpack.c.l.b16 %v117
    %v172 = vunpack.c.h.b16 %v117
    %v173 = vunpack.c.l.b16 %v118
    %v174 = vunpack.c.h.b16 %v118
    %v175 = vunpack.c.l.b16 %v119
    %v176 = vunpack.c.h.b16 %v119
    %v177 = vunpack.c.l.b16 %v120
    %v178 = vunpack.c.h.b16 %v120
    %v179 = vunpack.c.l.b16 %v121
    %v180 = vunpack.c.h.b16 %v121
    %v181 = vunpack.c.l.b16 %v122
    %v182 = vunpack.c.h.b16 %v122
    %v183 = vunpack.c.l.b16 %v123
    %v184 = vunpack.c.h.b16 %v123
    %v185 = vunpack.c.l.b16 %v124
    %v186 = vunpack.c.h.b16 %v124
    %v187 = vunpack.c.l.b16 %v125
    %v188 = vunpack.c.h.b16 %v125
    %v189 = vunpack.c.l.b16 %v126
    %v190 = vunpack.c.h.b16 %v126
    %v191 = vunpack.c.l.b16 %v127
    %v192 = vunpack.c.h.b16 %v127
    %v193 = vunpack.c.l.b16 %v128
    %v194 = vunpack.c.h.b16 %v128
    %v195 = vunpack.c.l.b16 %v129
    %v196 = vunpack.c.h.b16 %v129
    %v197 = vunpack.c.l.b16 %v130
    %v198 = vunpack.c.h.b16 %v130
    %v199 = vunpack.c.l.b16 %v131
    %v200 = vunpack.c.h.b16 %v131
    %v201 = vpack.c.b16 %v173, %v169
    %v202 = vpack.c.b16 %v174, %v170
    %v203 = vpack.c.b16 %v175, %v171
    %v204 = vpack.c.b16 %v176, %v172
    %v205 = vpack.c.b16 %v181, %v177
    %v206 = vpack.c.b16 %v182, %v178
    %v207 = vpack.c.b16 %v183, %v179
    %v208 = vpack.c.b16 %v184, %v180
    %v209 = vpack.c.b16 %v189, %v185
    %v210 = vpack.c.b16 %v190, %v186
    %v211 = vpack.c.b16 %v191, %v187
    %v212 = vpack.c.b16 %v192, %v188
    %v213 = vpack.c.b16 %v197, %v193
    %v214 = vpack.c.b16 %v198, %v194
    %v215 = vpack.c.b16 %v199, %v195
    %v216 = vpack.c.b16 %v200, %v196
    %vm233 = vcmask 523264
    %v235 = vsel %vm233, %v115, 0
    %237 = vmatprep.subr.bf16.mxu0 0
    %238 = vmatpush1.bf16.msra.mxu0 0
    %239 = vmatprep.subr.bf16.mxu0 0
    %240 = vmatpush1.bf16.msra.mxu0 0
    %241 = vmatprep.subr.bf16.mxu0 0
    %242 = vmatpush1.bf16.msra.mxu0 0
    %243 = vmatprep.subr.bf16.mxu0 0
    %244 = vmatpush1.bf16.msra.mxu0 0
    %245 = vmatprep.subr.bf16.mxu0 %v214
    %246 = vmatpush1.bf16.msra.mxu0 %v213
    %247 = vmatprep.subr.bf16.mxu0 %v210
    %248 = vmatpush1.bf16.msra.mxu0 %v209
    %249 = vmatprep.subr.bf16.mxu0 %v206
    %250 = vmatpush1.bf16.msra.mxu0 %v205
    %251 = vmatprep.subr.bf16.mxu0 %v202
    %252 = vmatpush1.bf16.msra.mxu0 %v201
    %253 = vmatprep.subr.bf16.mxu0 0
    %254 = vmatpush2.bf16.msra.mxu0 0
    %255 = vmatprep.subr.bf16.mxu0 0
    %256 = vmatpush2.bf16.msra.mxu0 0
    %257 = vmatprep.subr.bf16.mxu0 0
    %258 = vmatpush2.bf16.msra.mxu0 0
    %259 = vmatprep.subr.bf16.mxu0 0
    %260 = vmatpush2.bf16.msra.mxu0 0
    %261 = vmatprep.subr.bf16.mxu0 0
    %262 = vmatpush2.bf16.msra.mxu0 0
    %263 = vmatprep.subr.bf16.mxu0 0
    %264 = vmatpush2.bf16.msra.mxu0 0
    %265 = vmatprep.subr.bf16.mxu0 0
    %266 = vmatpush2.bf16.msra.mxu0 0
    %267 = vmatprep.subr.bf16.mxu0 0
    %268 = vmatpush2.bf16.msra.mxu0 0
    %269 = vmatprep.mubr.bf16.mxu0 0
    %270 = vmatmul.mubr.bf16.gmra.mxu0 %v235
    %v271 = vpop.f32.mrf.mxu0
    %v272 = vadd.f32 %v136, %v271
    %v273 = vpop.f32.mrf.mxu0
    %v274 = vadd.f32 %v140, %v273
    %v275 = vpop.f32.mrf.mxu0
    %v276 = vpop.f32.mrf.mxu0
    %277 = vdwg.mxu0
    %278 = vmatprep.subr.bf16.mxu0 0
    %279 = vmatpush1.bf16.msra.mxu0 0
    %280 = vmatprep.subr.bf16.mxu0 0
    %281 = vmatpush1.bf16.msra.mxu0 0
    %282 = vmatprep.subr.bf16.mxu0 0
    %283 = vmatpush1.bf16.msra.mxu0 0
    %284 = vmatprep.subr.bf16.mxu0 0
    %285 = vmatpush1.bf16.msra.mxu0 0
    %286 = vmatprep.subr.bf16.mxu0 %v216
    %287 = vmatpush1.bf16.msra.mxu0 %v215
    %288 = vmatprep.subr.bf16.mxu0 %v212
    %289 = vmatpush1.bf16.msra.mxu0 %v211
    %290 = vmatprep.subr.bf16.mxu0 %v208
    %291 = vmatpush1.bf16.msra.mxu0 %v207
    %292 = vmatprep.subr.bf16.mxu0 %v204
    %293 = vmatpush1.bf16.msra.mxu0 %v203
    %294 = vmatprep.subr.bf16.mxu0 0
    %295 = vmatpush2.bf16.msra.mxu0 0
    %296 = vmatprep.subr.bf16.mxu0 0
    %297 = vmatpush2.bf16.msra.mxu0 0
    %298 = vmatprep.subr.bf16.mxu0 0
    %299 = vmatpush2.bf16.msra.mxu0 0
    %300 = vmatprep.subr.bf16.mxu0 0
    %301 = vmatpush2.bf16.msra.mxu0 0
    %302 = vmatprep.subr.bf16.mxu0 0
    %303 = vmatpush2.bf16.msra.mxu0 0
    %304 = vmatprep.subr.bf16.mxu0 0
    %305 = vmatpush2.bf16.msra.mxu0 0
    %306 = vmatprep.subr.bf16.mxu0 0
    %307 = vmatpush2.bf16.msra.mxu0 0
    %308 = vmatprep.subr.bf16.mxu0 0
    %309 = vmatpush2.bf16.msra.mxu0 0
    %310 = vmatprep.mubr.bf16.mxu0 0
    %311 = vmatmul.mubr.bf16.gmra.mxu0 %v235
    %v312 = vpop.f32.mrf.mxu0
    %v313 = vadd.f32 %v144, %v312
    %v314 = vpop.f32.mrf.mxu0
    %v315 = vadd.f32 %v148, %v314
    %v316 = vpop.f32.mrf.mxu0
    %v317 = vpop.f32.mrf.mxu0
    %318 = vdwg.mxu0
    %v319 = vadd.f32 %v272, %v274
    %v320 = vadd.f32 %v319, %v313
    %v321 = vadd.f32 %v320, %v315
    %322 = vadd.xlane.f32.xlu0 %v321
    %v323 = vpop.xlane.xlu0 %322
    %v324 = vmul.f32 %v272, %v272
    %v325 = vmul.f32 %v274, %v274
    %v326 = vmul.f32 %v313, %v313
    %v327 = vmul.f32 %v315, %v315
    %v328 = vadd.f32 %v324, %v325
    %v329 = vadd.f32 %v328, %v326
    %v330 = vadd.f32 %v329, %v327
    %331 = vadd.xlane.f32.xlu0 %v330
    %v332 = vpop.xlane.xlu0 %331
    %v333 = vmul.f32 %v323, 0.0025
    %v334 = vmul.f32 %v332, 0.0025
    %v335 = vmul.f32 %v333, %v333
    %v336 = vsub.f32 %v334, %v335
    %v337 = vmax.f32 %v336, 0.0
    %v338 = vsub.f32 %v272, %v333
    %v339 = vsub.f32 %v274, %v333
    %v340 = vsub.f32 %v313, %v333
    %v341 = vsub.f32 %v315, %v333
    %v342 = vadd.f32 %v337, 1e-05
    %v343 = vrsqrt.pop %v342
    %v344 = vmul.f32 %v338, %v343
    %v345 = vmul.f32 %v339, %v343
    %v346 = vmul.f32 %v340, %v343
    %v347 = vmul.f32 %v341, %v343
    %v349 = vlaneseq
    %v350 = vshrl.u32 %v349, 7
    %v351 = vsub.s32 0, %v350
    %v352 = vrot.slane %v106, %v351
    %v353 = vlaneseq
    %v354 = vshrl.u32 %v353, 7
    %v355 = vsub.s32 1, %v354
    %v356 = vrot.slane %v106, %v355
    %v357 = vlaneseq
    %v358 = vshrl.u32 %v357, 7
    %v359 = vsub.s32 2, %v358
    %v360 = vrot.slane %v106, %v359
    %v361 = vlaneseq
    %v362 = vshrl.u32 %v361, 7
    %v363 = vsub.s32 3, %v362
    %v364 = vrot.slane %v106, %v363
    %v369 = vmul.f32 %v344, %v352
    %v370 = vmul.f32 %v345, %v356
    %v371 = vmul.f32 %v346, %v360
    %v372 = vmul.f32 %v347, %v364
    %v374 = vlaneseq
    %v375 = vshrl.u32 %v374, 7
    %v376 = vsub.s32 0, %v375
    %v377 = vrot.slane %v108, %v376
    %v378 = vlaneseq
    %v379 = vshrl.u32 %v378, 7
    %v380 = vsub.s32 1, %v379
    %v381 = vrot.slane %v108, %v380
    %v382 = vlaneseq
    %v383 = vshrl.u32 %v382, 7
    %v384 = vsub.s32 2, %v383
    %v385 = vrot.slane %v108, %v384
    %v386 = vlaneseq
    %v387 = vshrl.u32 %v386, 7
    %v388 = vsub.s32 3, %v387
    %v389 = vrot.slane %v108, %v388
    %v394 = vadd.f32 %v369, %v377
    %v395 = vadd.f32 %v370, %v381
    %v396 = vadd.f32 %v371, %v385
    %v397 = vadd.f32 %v372, %v389
    %v398 = vmax.f32 %v394, 0.0
    %v399 = vmax.f32 %v395, 0.0
    %v400 = vmax.f32 %v396, 0.0
    %v401 = vmax.f32 %v397, 0.0
    %v402 = vpack.c.bf16 %v398, %v398
    %v403 = vpack.c.bf16 %v399, %v399
    %v404 = vpack.c.bf16 %v400, %v400
    %v405 = vpack.c.bf16 %v401, %v401
    %v406 = vld [vmem:[#allocation8] sm:$0xff]
    %v407 = vld [vmem:[#allocation8 + $0x8] sm:$0xf]
    %v408 = vld [vmem:[#allocation8 + $0xc] sm:$0xff]
    %v409 = vld [vmem:[#allocation8 + $0x14] sm:$0xf]
    %v410 = vld [vmem:[#allocation8 + $0x18] sm:$0xff]
    %v411 = vld [vmem:[#allocation8 + $0x20] sm:$0xf]
    %v412 = vld [vmem:[#allocation8 + $0x24] sm:$0xff]
    %v413 = vld [vmem:[#allocation8 + $0x2c] sm:$0xf]
    %v414 = vld [vmem:[#allocation8 + $0x30] sm:$0xff]
    %v415 = vld [vmem:[#allocation8 + $0x38] sm:$0xf]
    %v416 = vld [vmem:[#allocation8 + $0x3c] sm:$0xff]
    %v417 = vld [vmem:[#allocation8 + $0x44] sm:$0xf]
    %v418 = vld [vmem:[#allocation8 + $0x48] sm:$0xff]
    %v419 = vld [vmem:[#allocation8 + $0x50] sm:$0xf]
    %v420 = vld [vmem:[#allocation8 + $0x54] sm:$0xff]
    %v421 = vld [vmem:[#allocation8 + $0x5c] sm:$0xf]
    %v422 = vld [vmem:[#allocation8 + $0x60] sm:$0xff]
    %v423 = vld [vmem:[#allocation8 + $0x68] sm:$0xf]
    %v424 = vld [vmem:[#allocation8 + $0x6c] sm:$0xff]
    %v425 = vld [vmem:[#allocation8 + $0x74] sm:$0xf]
    %v426 = vld [vmem:[#allocation8 + $0x78] sm:$0xff]
    %v427 = vld [vmem:[#allocation8 + $0x80] sm:$0xf]
    %v428 = vld [vmem:[#allocation8 + $0x84] sm:$0xff]
    %v429 = vld [vmem:[#allocation8 + $0x8c] sm:$0xf]
    %v430 = vld [vmem:[#allocation8 + $0x90] sm:$0xff]
    %v431 = vld [vmem:[#allocation8 + $0x98] sm:$0xf]
    %v432 = vld [vmem:[#allocation8 + $0x9c] sm:$0xff]
    %v433 = vld [vmem:[#allocation8 + $0xa4] sm:$0xf]
    %v434 = vld [vmem:[#allocation8 + $0xa8] sm:$0xff]
    %v435 = vld [vmem:[#allocation8 + $0xb0] sm:$0xf]
    %v436 = vld [vmem:[#allocation8 + $0xb4] sm:$0xff]
    %v437 = vld [vmem:[#allocation8 + $0xbc] sm:$0xf]
    %v438 = vld [vmem:[#allocation8 + $0xc0] sm:$0xff]
    %v439 = vld [vmem:[#allocation8 + $0xc8] sm:$0xf]
    %v440 = vld [vmem:[#allocation8 + $0xcc] sm:$0xff]
    %v441 = vld [vmem:[#allocation8 + $0xd4] sm:$0xf]
    %v442 = vld [vmem:[#allocation8 + $0xd8] sm:$0xff]
    %v443 = vld [vmem:[#allocation8 + $0xe0] sm:$0xf]
    %v444 = vld [vmem:[#allocation8 + $0xe4] sm:$0xff]
    %v445 = vld [vmem:[#allocation8 + $0xec] sm:$0xf]
    %v446 = vld [vmem:[#allocation8 + $0xf0] sm:$0xff]
    %v447 = vld [vmem:[#allocation8 + $0xf8] sm:$0xf]
    %v448 = vld [vmem:[#allocation8 + $0xfc] sm:$0xff]
    %v449 = vld [vmem:[#allocation8 + $0x104] sm:$0xf]
    %v450 = vld [vmem:[#allocation8 + $0x108] sm:$0xff]
    %v451 = vld [vmem:[#allocation8 + $0x110] sm:$0xf]
    %v452 = vld [vmem:[#allocation8 + $0x114] sm:$0xff]
    %v453 = vld [vmem:[#allocation8 + $0x11c] sm:$0xf]
    %v454 = vld [vmem:[#allocation8 + $0x120] sm:$0xff]
    %v455 = vld [vmem:[#allocation8 + $0x128] sm:$0xf]
    %v456 = vld [vmem:[#allocation8 + $0x12c] sm:$0xff]
    %v457 = vld [vmem:[#allocation8 + $0x134] sm:$0xf]
    %v458 = vld [vmem:[#allocation8 + $0x138] sm:$0xff]
    %v459 = vld [vmem:[#allocation8 + $0x140] sm:$0xf]
    %v460 = vld [vmem:[#allocation8 + $0x144] sm:$0xff]
    %v461 = vld [vmem:[#allocation8 + $0x14c] sm:$0xf]
    %v462 = vld [vmem:[#allocation8 + $0x150] sm:$0xff]
    %v463 = vld [vmem:[#allocation8 + $0x158] sm:$0xf]
    %v464 = vld [vmem:[#allocation8 + $0x15c] sm:$0xff]
    %v465 = vld [vmem:[#allocation8 + $0x164] sm:$0xf]
    %v466 = vld [vmem:[#allocation8 + $0x168] sm:$0xff]
    %v467 = vld [vmem:[#allocation8 + $0x170] sm:$0xf]
    %v468 = vld [vmem:[#allocation8 + $0x174] sm:$0xff]
    %v469 = vld [vmem:[#allocation8 + $0x17c] sm:$0xf]
    %v470 = vld [vmem:[#allocation8 + $0x180] sm:$0xff]
    %v471 = vld [vmem:[#allocation8 + $0x188] sm:$0xf]
    %v472 = vld [vmem:[#allocation8 + $0x18c] sm:$0xff]
    %v473 = vld [vmem:[#allocation8 + $0x194] sm:$0xf]
    %v474 = vld [vmem:[#allocation8 + $0x198] sm:$0xff]
    %v475 = vld [vmem:[#allocation8 + $0x1a0] sm:$0xf]
    %v476 = vld [vmem:[#allocation8 + $0x1a4] sm:$0xff]
    %v477 = vld [vmem:[#allocation8 + $0x1ac] sm:$0xf]
    %v478 = vld [vmem:[#allocation8 + $0x1b0] sm:$0xff]
    %v479 = vld [vmem:[#allocation8 + $0x1b8] sm:$0xf]
    %v480 = vld [vmem:[#allocation8 + $0x1bc] sm:$0xff]
    %v481 = vld [vmem:[#allocation8 + $0x1c4] sm:$0xf]
    %v482 = vld [vmem:[#allocation8 + $0x1c8] sm:$0xff]
    %v483 = vld [vmem:[#allocation8 + $0x1d0] sm:$0xf]
    %v484 = vld [vmem:[#allocation8 + $0x1d4] sm:$0xff]
    %v485 = vld [vmem:[#allocation8 + $0x1dc] sm:$0xf]
    %v486 = vld [vmem:[#allocation8 + $0x1e0] sm:$0xff]
    %v487 = vld [vmem:[#allocation8 + $0x1e8] sm:$0xf]
    %v488 = vld [vmem:[#allocation8 + $0x1ec] sm:$0xff]
    %v489 = vld [vmem:[#allocation8 + $0x1f4] sm:$0xf]
    %v490 = vld [vmem:[#allocation8 + $0x1f8] sm:$0xff]
    %v491 = vld [vmem:[#allocation8 + $0x200] sm:$0xf]
    %v492 = vld [vmem:[#allocation8 + $0x204] sm:$0xff]
    %v493 = vld [vmem:[#allocation8 + $0x20c] sm:$0xf]
    %v494 = vld [vmem:[#allocation8 + $0x210] sm:$0xff]
    %v495 = vld [vmem:[#allocation8 + $0x218] sm:$0xf]
    %v496 = vld [vmem:[#allocation8 + $0x21c] sm:$0xff]
    %v497 = vld [vmem:[#allocation8 + $0x224] sm:$0xf]
    %v498 = vld [vmem:[#allocation8 + $0x228] sm:$0xff]
    %v499 = vld [vmem:[#allocation8 + $0x230] sm:$0xf]
    %v500 = vld [vmem:[#allocation8 + $0x234] sm:$0xff]
    %v501 = vld [vmem:[#allocation8 + $0x23c] sm:$0xf]
    %v502 = vld [vmem:[#allocation8 + $0x240] sm:$0xff]
    %v503 = vld [vmem:[#allocation8 + $0x248] sm:$0xf]
    %v504 = vld [vmem:[#allocation8 + $0x24c] sm:$0xff]
    %v505 = vld [vmem:[#allocation8 + $0x254] sm:$0xf]
    %v506 = vld [vmem:[#allocation8 + $0x258] sm:$0xff]
    %v507 = vld [vmem:[#allocation8 + $0x260] sm:$0xf]
    %v508 = vld [vmem:[#allocation8 + $0x264] sm:$0xff]
    %v509 = vld [vmem:[#allocation8 + $0x26c] sm:$0xf]
    %v510 = vld [vmem:[#allocation8 + $0x270] sm:$0xff]
    %v511 = vld [vmem:[#allocation8 + $0x278] sm:$0xf]
    %v512 = vld [vmem:[#allocation8 + $0x27c] sm:$0xff]
    %v513 = vld [vmem:[#allocation8 + $0x284] sm:$0xf]
    %v514 = vld [vmem:[#allocation8 + $0x288] sm:$0xff]
    %v515 = vld [vmem:[#allocation8 + $0x290] sm:$0xf]
    %v516 = vld [vmem:[#allocation8 + $0x294] sm:$0xff]
    %v517 = vld [vmem:[#allocation8 + $0x29c] sm:$0xf]
    %v518 = vld [vmem:[#allocation8 + $0x2a0] sm:$0xff]
    %v519 = vld [vmem:[#allocation8 + $0x2a8] sm:$0xf]
    %v520 = vld [vmem:[#allocation8 + $0x2ac] sm:$0xff]
    %v521 = vld [vmem:[#allocation8 + $0x2b4] sm:$0xf]
    %v522 = vld [vmem:[#allocation8 + $0x2b8] sm:$0xff]
    %v523 = vld [vmem:[#allocation8 + $0x2c0] sm:$0xf]
    %v524 = vld [vmem:[#allocation8 + $0x2c4] sm:$0xff]
    %v525 = vld [vmem:[#allocation8 + $0x2cc] sm:$0xf]
    %v526 = vld [vmem:[#allocation8 + $0x2d0] sm:$0xff]
    %v527 = vld [vmem:[#allocation8 + $0x2d8] sm:$0xf]
    %v528 = vld [vmem:[#allocation8 + $0x2dc] sm:$0xff]
    %v529 = vld [vmem:[#allocation8 + $0x2e4] sm:$0xf]
    %v530 = vld [vmem:[#allocation8 + $0x2e8] sm:$0xff]
    %v531 = vld [vmem:[#allocation8 + $0x2f0] sm:$0xf]
    %v532 = vld [vmem:[#allocation8 + $0x2f4] sm:$0xff]
    %v533 = vld [vmem:[#allocation8 + $0x2fc] sm:$0xf]
    %v535 = vlaneseq
    %v536 = vshrl.u32 %v535, 7
    %v537 = vsub.s32 0, %v536
    %v538 = vrot.slane %v109, %v537
    %v539 = vlaneseq
    %v540 = vshrl.u32 %v539, 7
    %v541 = vsub.s32 1, %v540
    %v542 = vrot.slane %v109, %v541
    %v543 = vlaneseq
    %v544 = vshrl.u32 %v543, 7
    %v545 = vsub.s32 2, %v544
    %v546 = vrot.slane %v109, %v545
    %v678 = vunpack.c.l.b16 %v406
    %v679 = vunpack.c.h.b16 %v406
    %v680 = vunpack.c.l.b16 %v407
    %v681 = vunpack.c.l.b16 %v408
    %v682 = vunpack.c.h.b16 %v408
    %v683 = vunpack.c.l.b16 %v409
    %v684 = vunpack.c.l.b16 %v410
    %v685 = vunpack.c.h.b16 %v410
    %v686 = vunpack.c.l.b16 %v411
    %v687 = vunpack.c.l.b16 %v412
    %v688 = vunpack.c.h.b16 %v412
    %v689 = vunpack.c.l.b16 %v413
    %v690 = vunpack.c.l.b16 %v414
    %v691 = vunpack.c.h.b16 %v414
    %v692 = vunpack.c.l.b16 %v415
    %v693 = vunpack.c.l.b16 %v416
    %v694 = vunpack.c.h.b16 %v416
    %v695 = vunpack.c.l.b16 %v417
    %v696 = vunpack.c.l.b16 %v418
    %v697 = vunpack.c.h.b16 %v418
    %v698 = vunpack.c.l.b16 %v419
    %v699 = vunpack.c.l.b16 %v420
    %v700 = vunpack.c.h.b16 %v420
    %v701 = vunpack.c.l.b16 %v421
    %v702 = vunpack.c.l.b16 %v422
    %v703 = vunpack.c.h.b16 %v422
    %v704 = vunpack.c.l.b16 %v423
    %v705 = vunpack.c.l.b16 %v424
    %v706 = vunpack.c.h.b16 %v424
    %v707 = vunpack.c.l.b16 %v425
    %v708 = vunpack.c.l.b16 %v426
    %v709 = vunpack.c.h.b16 %v426
    %v710 = vunpack.c.l.b16 %v427
    %v711 = vunpack.c.l.b16 %v428
    %v712 = vunpack.c.h.b16 %v428
    %v713 = vunpack.c.l.b16 %v429
    %v714 = vunpack.c.l.b16 %v430
    %v715 = vunpack.c.h.b16 %v430
    %v716 = vunpack.c.l.b16 %v431
    %v717 = vunpack.c.l.b16 %v432
    %v718 = vunpack.c.h.b16 %v432
    %v719 = vunpack.c.l.b16 %v433
    %v720 = vunpack.c.l.b16 %v434
    %v721 = vunpack.c.h.b16 %v434
    %v722 = vunpack.c.l.b16 %v435
    %v723 = vunpack.c.l.b16 %v436
    %v724 = vunpack.c.h.b16 %v436
    %v725 = vunpack.c.l.b16 %v437
    %v726 = vunpack.c.l.b16 %v438
    %v727 = vunpack.c.h.b16 %v438
    %v728 = vunpack.c.l.b16 %v439
    %v729 = vunpack.c.l.b16 %v440
    %v730 = vunpack.c.h.b16 %v440
    %v731 = vunpack.c.l.b16 %v441
    %v732 = vunpack.c.l.b16 %v442
    %v733 = vunpack.c.h.b16 %v442
    %v734 = vunpack.c.l.b16 %v443
    %v735 = vunpack.c.l.b16 %v444
    %v736 = vunpack.c.h.b16 %v444
    %v737 = vunpack.c.l.b16 %v445
    %v738 = vunpack.c.l.b16 %v446
    %v739 = vunpack.c.h.b16 %v446
    %v740 = vunpack.c.l.b16 %v447
    %v741 = vunpack.c.l.b16 %v448
    %v742 = vunpack.c.h.b16 %v448
    %v743 = vunpack.c.l.b16 %v449
    %v744 = vunpack.c.l.b16 %v450
    %v745 = vunpack.c.h.b16 %v450
    %v746 = vunpack.c.l.b16 %v451
    %v747 = vunpack.c.l.b16 %v452
    %v748 = vunpack.c.h.b16 %v452
    %v749 = vunpack.c.l.b16 %v453
    %v750 = vunpack.c.l.b16 %v454
    %v751 = vunpack.c.h.b16 %v454
    %v752 = vunpack.c.l.b16 %v455
    %v753 = vunpack.c.l.b16 %v456
    %v754 = vunpack.c.h.b16 %v456
    %v755 = vunpack.c.l.b16 %v457
    %v756 = vunpack.c.l.b16 %v458
    %v757 = vunpack.c.h.b16 %v458
    %v758 = vunpack.c.l.b16 %v459
    %v759 = vunpack.c.l.b16 %v460
    %v760 = vunpack.c.h.b16 %v460
    %v761 = vunpack.c.l.b16 %v461
    %v762 = vunpack.c.l.b16 %v462
    %v763 = vunpack.c.h.b16 %v462
    %v764 = vunpack.c.l.b16 %v463
    %v765 = vunpack.c.l.b16 %v464
    %v766 = vunpack.c.h.b16 %v464
    %v767 = vunpack.c.l.b16 %v465
    %v768 = vunpack.c.l.b16 %v466
    %v769 = vunpack.c.h.b16 %v466
    %v770 = vunpack.c.l.b16 %v467
    %v771 = vunpack.c.l.b16 %v468
    %v772 = vunpack.c.h.b16 %v468
    %v773 = vunpack.c.l.b16 %v469
    %v774 = vunpack.c.l.b16 %v470
    %v775 = vunpack.c.h.b16 %v470
    %v776 = vunpack.c.l.b16 %v471
    %v777 = vunpack.c.l.b16 %v472
    %v778 = vunpack.c.h.b16 %v472
    %v779 = vunpack.c.l.b16 %v473
    %v780 = vunpack.c.l.b16 %v474
    %v781 = vunpack.c.h.b16 %v474
    %v782 = vunpack.c.l.b16 %v475
    %v783 = vunpack.c.l.b16 %v476
    %v784 = vunpack.c.h.b16 %v476
    %v785 = vunpack.c.l.b16 %v477
    %v786 = vunpack.c.l.b16 %v478
    %v787 = vunpack.c.h.b16 %v478
    %v788 = vunpack.c.l.b16 %v479
    %v789 = vunpack.c.l.b16 %v480
    %v790 = vunpack.c.h.b16 %v480
    %v791 = vunpack.c.l.b16 %v481
    %v792 = vunpack.c.l.b16 %v482
    %v793 = vunpack.c.h.b16 %v482
    %v794 = vunpack.c.l.b16 %v483
    %v795 = vunpack.c.l.b16 %v484
    %v796 = vunpack.c.h.b16 %v484
    %v797 = vunpack.c.l.b16 %v485
    %v798 = vunpack.c.l.b16 %v486
    %v799 = vunpack.c.h.b16 %v486
    %v800 = vunpack.c.l.b16 %v487
    %v801 = vunpack.c.l.b16 %v488
    %v802 = vunpack.c.h.b16 %v488
    %v803 = vunpack.c.l.b16 %v489
    %v804 = vunpack.c.l.b16 %v490
    %v805 = vunpack.c.h.b16 %v490
    %v806 = vunpack.c.l.b16 %v491
    %v807 = vunpack.c.l.b16 %v492
    %v808 = vunpack.c.h.b16 %v492
    %v809 = vunpack.c.l.b16 %v493
    %v810 = vunpack.c.l.b16 %v494
    %v811 = vunpack.c.h.b16 %v494
    %v812 = vunpack.c.l.b16 %v495
    %v813 = vunpack.c.l.b16 %v496
    %v814 = vunpack.c.h.b16 %v496
    %v815 = vunpack.c.l.b16 %v497
    %v816 = vunpack.c.l.b16 %v498
    %v817 = vunpack.c.h.b16 %v498
    %v818 = vunpack.c.l.b16 %v499
    %v819 = vunpack.c.l.b16 %v500
    %v820 = vunpack.c.h.b16 %v500
    %v821 = vunpack.c.l.b16 %v501
    %v822 = vunpack.c.l.b16 %v502
    %v823 = vunpack.c.h.b16 %v502
    %v824 = vunpack.c.l.b16 %v503
    %v825 = vunpack.c.l.b16 %v504
    %v826 = vunpack.c.h.b16 %v504
    %v827 = vunpack.c.l.b16 %v505
    %v828 = vunpack.c.l.b16 %v506
    %v829 = vunpack.c.h.b16 %v506
    %v830 = vunpack.c.l.b16 %v507
    %v831 = vunpack.c.l.b16 %v508
    %v832 = vunpack.c.h.b16 %v508
    %v833 = vunpack.c.l.b16 %v509
    %v834 = vunpack.c.l.b16 %v510
    %v835 = vunpack.c.h.b16 %v510
    %v836 = vunpack.c.l.b16 %v511
    %v837 = vunpack.c.l.b16 %v512
    %v838 = vunpack.c.h.b16 %v512
    %v839 = vunpack.c.l.b16 %v513
    %v840 = vunpack.c.l.b16 %v514
    %v841 = vunpack.c.h.b16 %v514
    %v842 = vunpack.c.l.b16 %v515
    %v843 = vunpack.c.l.b16 %v516
    %v844 = vunpack.c.h.b16 %v516
    %v845 = vunpack.c.l.b16 %v517
    %v846 = vunpack.c.l.b16 %v518
    %v847 = vunpack.c.h.b16 %v518
    %v848 = vunpack.c.l.b16 %v519
    %v849 = vunpack.c.l.b16 %v520
    %v850 = vunpack.c.h.b16 %v520
    %v851 = vunpack.c.l.b16 %v521
    %v852 = vunpack.c.l.b16 %v522
    %v853 = vunpack.c.h.b16 %v522
    %v854 = vunpack.c.l.b16 %v523
    %v855 = vunpack.c.l.b16 %v524
    %v856 = vunpack.c.h.b16 %v524
    %v857 = vunpack.c.l.b16 %v525
    %v858 = vunpack.c.l.b16 %v526
    %v859 = vunpack.c.h.b16 %v526
    %v860 = vunpack.c.l.b16 %v527
    %v861 = vunpack.c.l.b16 %v528
    %v862 = vunpack.c.h.b16 %v528
    %v863 = vunpack.c.l.b16 %v529
    %v864 = vunpack.c.l.b16 %v530
    %v865 = vunpack.c.h.b16 %v530
    %v866 = vunpack.c.l.b16 %v531
    %v867 = vunpack.c.l.b16 %v532
    %v868 = vunpack.c.h.b16 %v532
    %v869 = vunpack.c.l.b16 %v533
    %v870 = vpack.c.b16 %v681, %v678
    %v871 = vpack.c.b16 %v682, %v679
    %v872 = vpack.c.b16 %v683, %v680
    %v873 = vpack.c.b16 %v687, %v684
    %v874 = vpack.c.b16 %v688, %v685
    %v875 = vpack.c.b16 %v689, %v686
    %v876 = vpack.c.b16 %v693, %v690
    %v877 = vpack.c.b16 %v694, %v691
    %v878 = vpack.c.b16 %v695, %v692
    %v879 = vpack.c.b16 %v699, %v696
    %v880 = vpack.c.b16 %v700, %v697
    %v881 = vpack.c.b16 %v701, %v698
    %v882 = vpack.c.b16 %v705, %v702
    %v883 = vpack.c.b16 %v706, %v703
    %v884 = vpack.c.b16 %v707, %v704
    %v885 = vpack.c.b16 %v711, %v708
    %v886 = vpack.c.b16 %v712, %v709
    %v887 = vpack.c.b16 %v713, %v710
    %v888 = vpack.c.b16 %v717, %v714
    %v889 = vpack.c.b16 %v718, %v715
    %v890 = vpack.c.b16 %v719, %v716
    %v891 = vpack.c.b16 %v723, %v720
    %v892 = vpack.c.b16 %v724, %v721
    %v893 = vpack.c.b16 %v725, %v722
    %v894 = vpack.c.b16 %v729, %v726
    %v895 = vpack.c.b16 %v730, %v727
    %v896 = vpack.c.b16 %v731, %v728
    %v897 = vpack.c.b16 %v735, %v732
    %v898 = vpack.c.b16 %v736, %v733
    %v899 = vpack.c.b16 %v737, %v734
    %v900 = vpack.c.b16 %v741, %v738
    %v901 = vpack.c.b16 %v742, %v739
    %v902 = vpack.c.b16 %v743, %v740
    %v903 = vpack.c.b16 %v747, %v744
    %v904 = vpack.c.b16 %v748, %v745
    %v905 = vpack.c.b16 %v749, %v746
    %v906 = vpack.c.b16 %v753, %v750
    %v907 = vpack.c.b16 %v754, %v751
    %v908 = vpack.c.b16 %v755, %v752
    %v909 = vpack.c.b16 %v759, %v756
    %v910 = vpack.c.b16 %v760, %v757
    %v911 = vpack.c.b16 %v761, %v758
    %v912 = vpack.c.b16 %v765, %v762
    %v913 = vpack.c.b16 %v766, %v763
    %v914 = vpack.c.b16 %v767, %v764
    %v915 = vpack.c.b16 %v771, %v768
    %v916 = vpack.c.b16 %v772, %v769
    %v917 = vpack.c.b16 %v773, %v770
    %v918 = vpack.c.b16 %v777, %v774
    %v919 = vpack.c.b16 %v778, %v775
    %v920 = vpack.c.b16 %v779, %v776
    %v921 = vpack.c.b16 %v783, %v780
    %v922 = vpack.c.b16 %v784, %v781
    %v923 = vpack.c.b16 %v785, %v782
    %v924 = vpack.c.b16 %v789, %v786
    %v925 = vpack.c.b16 %v790, %v787
    %v926 = vpack.c.b16 %v791, %v788
    %v927 = vpack.c.b16 %v795, %v792
    %v928 = vpack.c.b16 %v796, %v793
    %v929 = vpack.c.b16 %v797, %v794
    %v930 = vpack.c.b16 %v801, %v798
    %v931 = vpack.c.b16 %v802, %v799
    %v932 = vpack.c.b16 %v803, %v800
    %v933 = vpack.c.b16 %v807, %v804
    %v934 = vpack.c.b16 %v808, %v805
    %v935 = vpack.c.b16 %v809, %v806
    %v936 = vpack.c.b16 %v813, %v810
    %v937 = vpack.c.b16 %v814, %v811
    %v938 = vpack.c.b16 %v815, %v812
    %v939 = vpack.c.b16 %v819, %v816
    %v940 = vpack.c.b16 %v820, %v817
    %v941 = vpack.c.b16 %v821, %v818
    %v942 = vpack.c.b16 %v825, %v822
    %v943 = vpack.c.b16 %v826, %v823
    %v944 = vpack.c.b16 %v827, %v824
    %v945 = vpack.c.b16 %v831, %v828
    %v946 = vpack.c.b16 %v832, %v829
    %v947 = vpack.c.b16 %v833, %v830
    %v948 = vpack.c.b16 %v837, %v834
    %v949 = vpack.c.b16 %v838, %v835
    %v950 = vpack.c.b16 %v839, %v836
    %v951 = vpack.c.b16 %v843, %v840
    %v952 = vpack.c.b16 %v844, %v841
    %v953 = vpack.c.b16 %v845, %v842
    %v954 = vpack.c.b16 %v849, %v846
    %v955 = vpack.c.b16 %v850, %v847
    %v956 = vpack.c.b16 %v851, %v848
    %v957 = vpack.c.b16 %v855, %v852
    %v958 = vpack.c.b16 %v856, %v853
    %v959 = vpack.c.b16 %v857, %v854
    %v960 = vpack.c.b16 %v861, %v858
    %v961 = vpack.c.b16 %v862, %v859
    %v962 = vpack.c.b16 %v863, %v860
    %v963 = vpack.c.b16 %v867, %v864
    %v964 = vpack.c.b16 %v868, %v865
    %v965 = vpack.c.b16 %v869, %v866
    %1062 = vmatprep.subr.bf16.mxu0 %v892
    %1063 = vmatpush1.bf16.msra.mxu0 %v891
    %1064 = vmatprep.subr.bf16.mxu0 %v889
    %1065 = vmatpush1.bf16.msra.mxu0 %v888
    %1066 = vmatprep.subr.bf16.mxu0 %v886
    %1067 = vmatpush1.bf16.msra.mxu0 %v885
    %1068 = vmatprep.subr.bf16.mxu0 %v883
    %1069 = vmatpush1.bf16.msra.mxu0 %v882
    %1070 = vmatprep.subr.bf16.mxu0 %v880
    %1071 = vmatpush1.bf16.msra.mxu0 %v879
    %1072 = vmatprep.subr.bf16.mxu0 %v877
    %1073 = vmatpush1.bf16.msra.mxu0 %v876
    %1074 = vmatprep.subr.bf16.mxu0 %v874
    %1075 = vmatpush1.bf16.msra.mxu0 %v873
    %1076 = vmatprep.subr.bf16.mxu0 %v871
    %1077 = vmatpush1.bf16.msra.mxu0 %v870
    %1078 = vmatprep.subr.bf16.mxu0 %v916
    %1079 = vmatpush2.bf16.msra.mxu0 %v915
    %1080 = vmatprep.subr.bf16.mxu0 %v913
    %1081 = vmatpush2.bf16.msra.mxu0 %v912
    %1082 = vmatprep.subr.bf16.mxu0 %v910
    %1083 = vmatpush2.bf16.msra.mxu0 %v909
    %1084 = vmatprep.subr.bf16.mxu0 %v907
    %1085 = vmatpush2.bf16.msra.mxu0 %v906
    %1086 = vmatprep.subr.bf16.mxu0 %v904
    %1087 = vmatpush2.bf16.msra.mxu0 %v903
    %1088 = vmatprep.subr.bf16.mxu0 %v901
    %1089 = vmatpush2.bf16.msra.mxu0 %v900
    %1090 = vmatprep.subr.bf16.mxu0 %v898
    %1091 = vmatpush2.bf16.msra.mxu0 %v897
    %1092 = vmatprep.subr.bf16.mxu0 %v895
    %1093 = vmatpush2.bf16.msra.mxu0 %v894
    %1094 = vmatprep.mubr.bf16.mxu0 %v403
    %1095 = vmatmul.mubr.bf16.gmra.mxu0 %v402
    %v1096 = vpop.f32.mrf.mxu0
    %v1097 = vadd.f32 %v538, %v1096
    %v1098 = vpop.f32.mrf.mxu0
    %v1099 = vadd.f32 %v542, %v1098
    %v1100 = vpop.f32.mrf.mxu0
    %v1101 = vpop.f32.mrf.mxu0
    %1102 = vdwg.mxu0
    %1103 = vmatprep.subr.bf16.mxu0 %v940
    %1104 = vmatpush1.bf16.msra.mxu0 %v939
    %1105 = vmatprep.subr.bf16.mxu0 %v937
    %1106 = vmatpush1.bf16.msra.mxu0 %v936
    %1107 = vmatprep.subr.bf16.mxu0 %v934
    %1108 = vmatpush1.bf16.msra.mxu0 %v933
    %1109 = vmatprep.subr.bf16.mxu0 %v931
    %1110 = vmatpush1.bf16.msra.mxu0 %v930
    %1111 = vmatprep.subr.bf16.mxu0 %v928
    %1112 = vmatpush1.bf16.msra.mxu0 %v927
    %1113 = vmatprep.subr.bf16.mxu0 %v925
    %1114 = vmatpush1.bf16.msra.mxu0 %v924
    %1115 = vmatprep.subr.bf16.mxu0 %v922
    %1116 = vmatpush1.bf16.msra.mxu0 %v921
    %1117 = vmatprep.subr.bf16.mxu0 %v919
    %1118 = vmatpush1.bf16.msra.mxu0 %v918
    %1119 = vmatprep.subr.bf16.mxu0 %v964
    %1120 = vmatpush2.bf16.msra.mxu0 %v963
    %1121 = vmatprep.subr.bf16.mxu0 %v961
    %1122 = vmatpush2.bf16.msra.mxu0 %v960
    %1123 = vmatprep.subr.bf16.mxu0 %v958
    %1124 = vmatpush2.bf16.msra.mxu0 %v957
    %1125 = vmatprep.subr.bf16.mxu0 %v955
    %1126 = vmatpush2.bf16.msra.mxu0 %v954
    %1127 = vmatprep.subr.bf16.mxu0 %v952
    %1128 = vmatpush2.bf16.msra.mxu0 %v951
    %1129 = vmatprep.subr.bf16.mxu0 %v949
    %1130 = vmatpush2.bf16.msra.mxu0 %v948
    %1131 = vmatprep.subr.bf16.mxu0 %v946
    %1132 = vmatpush2.bf16.msra.mxu0 %v945
    %1133 = vmatprep.subr.bf16.mxu0 %v943
    %1134 = vmatpush2.bf16.msra.mxu0 %v942
    %1135 = vmatprep.mubr.bf16.mxu0 %v405
    %1136 = vmatmul.mubr.bf16.gmra.mxu0 %v404
    %v1137 = vpop.f32.mrf.mxu0
    %v1138 = vadd.f32 %v1097, %v1137
    %v1139 = vpop.f32.mrf.mxu0
    %v1140 = vadd.f32 %v1099, %v1139
    %v1141 = vpop.f32.mrf.mxu0
    %v1142 = vpop.f32.mrf.mxu0
    %1143 = vdwg.mxu0
    %1144 = vmatprep.subr.bf16.mxu0 0
    %1145 = vmatpush1.bf16.msra.mxu0 %v893
    %1146 = vmatprep.subr.bf16.mxu0 0
    %1147 = vmatpush1.bf16.msra.mxu0 %v890
    %1148 = vmatprep.subr.bf16.mxu0 0
    %1149 = vmatpush1.bf16.msra.mxu0 %v887
    %1150 = vmatprep.subr.bf16.mxu0 0
    %1151 = vmatpush1.bf16.msra.mxu0 %v884
    %1152 = vmatprep.subr.bf16.mxu0 0
    %1153 = vmatpush1.bf16.msra.mxu0 %v881
    %1154 = vmatprep.subr.bf16.mxu0 0
    %1155 = vmatpush1.bf16.msra.mxu0 %v878
    %1156 = vmatprep.subr.bf16.mxu0 0
    %1157 = vmatpush1.bf16.msra.mxu0 %v875
    %1158 = vmatprep.subr.bf16.mxu0 0
    %1159 = vmatpush1.bf16.msra.mxu0 %v872
    %1160 = vmatprep.subr.bf16.mxu0 0
    %1161 = vmatpush2.bf16.msra.mxu0 %v917
    %1162 = vmatprep.subr.bf16.mxu0 0
    %1163 = vmatpush2.bf16.msra.mxu0 %v914
    %1164 = vmatprep.subr.bf16.mxu0 0
    %1165 = vmatpush2.bf16.msra.mxu0 %v911
    %1166 = vmatprep.subr.bf16.mxu0 0
    %1167 = vmatpush2.bf16.msra.mxu0 %v908
    %1168 = vmatprep.subr.bf16.mxu0 0
    %1169 = vmatpush2.bf16.msra.mxu0 %v905
    %1170 = vmatprep.subr.bf16.mxu0 0
    %1171 = vmatpush2.bf16.msra.mxu0 %v902
    %1172 = vmatprep.subr.bf16.mxu0 0
    %1173 = vmatpush2.bf16.msra.mxu0 %v899
    %1174 = vmatprep.subr.bf16.mxu0 0
    %1175 = vmatpush2.bf16.msra.mxu0 %v896
    %1176 = vmatprep.mubr.bf16.mxu0 %v403
    %1177 = vmatmul.mubr.bf16.gmra.mxu0 %v402
    %v1178 = vpop.f32.mrf.mxu0
    %v1179 = vadd.f32 %v546, %v1178
    %v1180 = vpop.f32.mrf.mxu0
    %v1181 = vpop.f32.mrf.mxu0
    %v1182 = vpop.f32.mrf.mxu0
    %1183 = vdwg.mxu0
    %1184 = vmatprep.subr.bf16.mxu0 0
    %1185 = vmatpush1.bf16.msra.mxu0 %v941
    %1186 = vmatprep.subr.bf16.mxu0 0
    %1187 = vmatpush1.bf16.msra.mxu0 %v938
    %1188 = vmatprep.subr.bf16.mxu0 0
    %1189 = vmatpush1.bf16.msra.mxu0 %v935
    %1190 = vmatprep.subr.bf16.mxu0 0
    %1191 = vmatpush1.bf16.msra.mxu0 %v932
    %1192 = vmatprep.subr.bf16.mxu0 0
    %1193 = vmatpush1.bf16.msra.mxu0 %v929
    %1194 = vmatprep.subr.bf16.mxu0 0
    %1195 = vmatpush1.bf16.msra.mxu0 %v926
    %1196 = vmatprep.subr.bf16.mxu0 0
    %1197 = vmatpush1.bf16.msra.mxu0 %v923
    %1198 = vmatprep.subr.bf16.mxu0 0
    %1199 = vmatpush1.bf16.msra.mxu0 %v920
    %1200 = vmatprep.subr.bf16.mxu0 0
    %1201 = vmatpush2.bf16.msra.mxu0 %v965
    %1202 = vmatprep.subr.bf16.mxu0 0
    %1203 = vmatpush2.bf16.msra.mxu0 %v962
    %1204 = vmatprep.subr.bf16.mxu0 0
    %1205 = vmatpush2.bf16.msra.mxu0 %v959
    %1206 = vmatprep.subr.bf16.mxu0 0
    %1207 = vmatpush2.bf16.msra.mxu0 %v956
    %1208 = vmatprep.subr.bf16.mxu0 0
    %1209 = vmatpush2.bf16.msra.mxu0 %v953
    %1210 = vmatprep.subr.bf16.mxu0 0
    %1211 = vmatpush2.bf16.msra.mxu0 %v950
    %1212 = vmatprep.subr.bf16.mxu0 0
    %1213 = vmatpush2.bf16.msra.mxu0 %v947
    %1214 = vmatprep.subr.bf16.mxu0 0
    %1215 = vmatpush2.bf16.msra.mxu0 %v944
    %1216 = vmatprep.mubr.bf16.mxu0 %v405
    %1217 = vmatmul.mubr.bf16.gmra.mxu0 %v404
    %v1218 = vpop.f32.mrf.mxu0
    %v1219 = vadd.f32 %v1179, %v1218
    %v1220 = vpop.f32.mrf.mxu0
    %v1221 = vpop.f32.mrf.mxu0
    %v1222 = vpop.f32.mrf.mxu0
    %1223 = vdwg.mxu0
    %v1224 = vadd.f32 %v1138, %v1140
    %v1225 = vadd.f32 %v1224, %v1219
    %1226 = vadd.xlane.f32.xlu0 %v1225
    %v1227 = vpop.xlane.xlu0 %1226
    %v1228 = vmul.f32 %v1138, %v1138
    %v1229 = vmul.f32 %v1140, %v1140
    %v1230 = vmul.f32 %v1219, %v1219
    %v1231 = vadd.f32 %v1228, %v1229
    %v1232 = vadd.f32 %v1231, %v1230
    %1233 = vadd.xlane.f32.xlu0 %v1232
    %v1234 = vpop.xlane.xlu0 %1233
    %v1235 = vmul.f32 %v1227, 0.0033333334
    %v1236 = vmul.f32 %v1234, 0.0033333334
    %v1237 = vmul.f32 %v1235, %v1235
    %v1238 = vsub.f32 %v1236, %v1237
    %v1239 = vmax.f32 %v1238, 0.0
    %v1240 = vsub.f32 %v1138, %v1235
    %v1241 = vsub.f32 %v1140, %v1235
    %v1242 = vsub.f32 %v1219, %v1235
    %v1243 = vadd.f32 %v1239, 1e-05
    %v1244 = vrsqrt.pop %v1243
    %v1245 = vmul.f32 %v1240, %v1244
    %v1246 = vmul.f32 %v1241, %v1244
    %v1247 = vmul.f32 %v1242, %v1244
    %v1249 = vlaneseq
    %v1250 = vshrl.u32 %v1249, 7
    %v1251 = vsub.s32 0, %v1250
    %v1252 = vrot.slane %v111, %v1251
    %v1253 = vlaneseq
    %v1254 = vshrl.u32 %v1253, 7
    %v1255 = vsub.s32 1, %v1254
    %v1256 = vrot.slane %v111, %v1255
    %v1257 = vlaneseq
    %v1258 = vshrl.u32 %v1257, 7
    %v1259 = vsub.s32 2, %v1258
    %v1260 = vrot.slane %v111, %v1259
    %v1264 = vmul.f32 %v1245, %v1252
    %v1265 = vmul.f32 %v1246, %v1256
    %v1266 = vmul.f32 %v1247, %v1260
    %v1268 = vlaneseq
    %v1269 = vshrl.u32 %v1268, 7
    %v1270 = vsub.s32 0, %v1269
    %v1271 = vrot.slane %v113, %v1270
    %v1272 = vlaneseq
    %v1273 = vshrl.u32 %v1272, 7
    %v1274 = vsub.s32 1, %v1273
    %v1275 = vrot.slane %v113, %v1274
    %v1276 = vlaneseq
    %v1277 = vshrl.u32 %v1276, 7
    %v1278 = vsub.s32 2, %v1277
    %v1279 = vrot.slane %v113, %v1278
    %v1283 = vadd.f32 %v1264, %v1271
    %v1284 = vadd.f32 %v1265, %v1275
    %v1285 = vadd.f32 %v1266, %v1279
    %v1286 = vmax.f32 %v1283, 0.0
    %v1287 = vmax.f32 %v1284, 0.0
    %v1288 = vmax.f32 %v1285, 0.0
    %v1289 = vpack.c.bf16 %v1286, %v1286
    %v1290 = vpack.c.bf16 %v1287, %v1287
    %v1291 = vpack.c.bf16 %v1288, %v1288
    %v1292 = vld [vmem:[#allocation11] sm:$0xf]
    %v1293 = vld [vmem:[#allocation11 + $0x4] sm:$0xf]
    %v1294 = vld [vmem:[#allocation11 + $0x8] sm:$0xf]
    %v1295 = vld [vmem:[#allocation11 + $0xc] sm:$0xf]
    %v1296 = vld [vmem:[#allocation11 + $0x10] sm:$0xf]
    %v1297 = vld [vmem:[#allocation11 + $0x14] sm:$0xf]
    %v1298 = vld [vmem:[#allocation11 + $0x18] sm:$0xf]
    %v1299 = vld [vmem:[#allocation11 + $0x1c] sm:$0xf]
    %v1300 = vld [vmem:[#allocation11 + $0x20] sm:$0xf]
    %v1301 = vld [vmem:[#allocation11 + $0x24] sm:$0xf]
    %v1302 = vld [vmem:[#allocation11 + $0x28] sm:$0xf]
    %v1303 = vld [vmem:[#allocation11 + $0x2c] sm:$0xf]
    %v1304 = vld [vmem:[#allocation11 + $0x30] sm:$0xf]
    %v1305 = vld [vmem:[#allocation11 + $0x34] sm:$0xf]
    %v1306 = vld [vmem:[#allocation11 + $0x38] sm:$0xf]
    %v1307 = vld [vmem:[#allocation11 + $0x3c] sm:$0xf]
    %v1308 = vld [vmem:[#allocation11 + $0x40] sm:$0xf]
    %v1309 = vld [vmem:[#allocation11 + $0x44] sm:$0xf]
    %v1310 = vld [vmem:[#allocation11 + $0x48] sm:$0xf]
    %v1311 = vld [vmem:[#allocation11 + $0x4c] sm:$0xf]
    %v1312 = vld [vmem:[#allocation11 + $0x50] sm:$0xf]
    %v1313 = vld [vmem:[#allocation11 + $0x54] sm:$0xf]
    %v1314 = vld [vmem:[#allocation11 + $0x58] sm:$0xf]
    %v1315 = vld [vmem:[#allocation11 + $0x5c] sm:$0xf]
    %v1316 = vld [vmem:[#allocation11 + $0x60] sm:$0xf]
    %v1317 = vld [vmem:[#allocation11 + $0x64] sm:$0xf]
    %v1318 = vld [vmem:[#allocation11 + $0x68] sm:$0xf]
    %v1319 = vld [vmem:[#allocation11 + $0x6c] sm:$0xf]
    %v1320 = vld [vmem:[#allocation11 + $0x70] sm:$0xf]
    %v1321 = vld [vmem:[#allocation11 + $0x74] sm:$0xf]
    %v1322 = vld [vmem:[#allocation11 + $0x78] sm:$0xf]
    %v1323 = vld [vmem:[#allocation11 + $0x7c] sm:$0xf]
    %v1324 = vld [vmem:[#allocation11 + $0x80] sm:$0xf]
    %v1325 = vld [vmem:[#allocation11 + $0x84] sm:$0xf]
    %v1326 = vld [vmem:[#allocation11 + $0x88] sm:$0xf]
    %v1327 = vld [vmem:[#allocation11 + $0x8c] sm:$0xf]
    %v1328 = vld [vmem:[#allocation11 + $0x90] sm:$0xf]
    %v1329 = vld [vmem:[#allocation11 + $0x94] sm:$0xf]
    %v1330 = vld [vmem:[#allocation11 + $0x98] sm:$0xf]
    %v1331 = vld [vmem:[#allocation11 + $0x9c] sm:$0xf]
    %v1332 = vld [vmem:[#allocation11 + $0xa0] sm:$0xf]
    %v1333 = vld [vmem:[#allocation11 + $0xa4] sm:$0xf]
    %v1334 = vld [vmem:[#allocation11 + $0xa8] sm:$0xf]
    %v1335 = vld [vmem:[#allocation11 + $0xac] sm:$0xf]
    %v1336 = vld [vmem:[#allocation11 + $0xb0] sm:$0xf]
    %v1337 = vld [vmem:[#allocation11 + $0xb4] sm:$0xf]
    %v1338 = vld [vmem:[#allocation11 + $0xb8] sm:$0xf]
    %v1339 = vld [vmem:[#allocation11 + $0xbc] sm:$0xf]
    %v1340 = vld [vmem:[%s6] sm:$0x1]
    %v1342 = vlaneseq
    %v1343 = vshrl.u32 %v1342, 7
    %v1344 = vsub.s32 0, %v1343
    %v1345 = vrot.slane %v1340, %v1344
    %v1395 = vunpack.c.l.b16 %v1292
    %v1396 = vunpack.c.l.b16 %v1293
    %v1397 = vunpack.c.l.b16 %v1294
    %v1398 = vunpack.c.l.b16 %v1295
    %v1399 = vunpack.c.l.b16 %v1296
    %v1400 = vunpack.c.l.b16 %v1297
    %v1401 = vunpack.c.l.b16 %v1298
    %v1402 = vunpack.c.l.b16 %v1299
    %v1403 = vunpack.c.l.b16 %v1300
    %v1404 = vunpack.c.l.b16 %v1301
    %v1405 = vunpack.c.l.b16 %v1302
    %v1406 = vunpack.c.l.b16 %v1303
    %v1407 = vunpack.c.l.b16 %v1304
    %v1408 = vunpack.c.l.b16 %v1305
    %v1409 = vunpack.c.l.b16 %v1306
    %v1410 = vunpack.c.l.b16 %v1307
    %v1411 = vunpack.c.l.b16 %v1308
    %v1412 = vunpack.c.l.b16 %v1309
    %v1413 = vunpack.c.l.b16 %v1310
    %v1414 = vunpack.c.l.b16 %v1311
    %v1415 = vunpack.c.l.b16 %v1312
    %v1416 = vunpack.c.l.b16 %v1313
    %v1417 = vunpack.c.l.b16 %v1314
    %v1418 = vunpack.c.l.b16 %v1315
    %v1419 = vunpack.c.l.b16 %v1316
    %v1420 = vunpack.c.l.b16 %v1317
    %v1421 = vunpack.c.l.b16 %v1318
    %v1422 = vunpack.c.l.b16 %v1319
    %v1423 = vunpack.c.l.b16 %v1320
    %v1424 = vunpack.c.l.b16 %v1321
    %v1425 = vunpack.c.l.b16 %v1322
    %v1426 = vunpack.c.l.b16 %v1323
    %v1427 = vunpack.c.l.b16 %v1324
    %v1428 = vunpack.c.l.b16 %v1325
    %v1429 = vunpack.c.l.b16 %v1326
    %v1430 = vunpack.c.l.b16 %v1327
    %v1431 = vunpack.c.l.b16 %v1328
    %v1432 = vunpack.c.l.b16 %v1329
    %v1433 = vunpack.c.l.b16 %v1330
    %v1434 = vunpack.c.l.b16 %v1331
    %v1435 = vunpack.c.l.b16 %v1332
    %v1436 = vunpack.c.l.b16 %v1333
    %v1437 = vunpack.c.l.b16 %v1334
    %v1438 = vunpack.c.l.b16 %v1335
    %v1439 = vunpack.c.l.b16 %v1336
    %v1440 = vunpack.c.l.b16 %v1337
    %v1441 = vunpack.c.l.b16 %v1338
    %v1442 = vunpack.c.l.b16 %v1339
    %v1443 = vpack.c.b16 %v1396, %v1395
    %v1444 = vpack.c.b16 %v1398, %v1397
    %v1445 = vpack.c.b16 %v1400, %v1399
    %v1446 = vpack.c.b16 %v1402, %v1401
    %v1447 = vpack.c.b16 %v1404, %v1403
    %v1448 = vpack.c.b16 %v1406, %v1405
    %v1449 = vpack.c.b16 %v1408, %v1407
    %v1450 = vpack.c.b16 %v1410, %v1409
    %v1451 = vpack.c.b16 %v1412, %v1411
    %v1452 = vpack.c.b16 %v1414, %v1413
    %v1453 = vpack.c.b16 %v1416, %v1415
    %v1454 = vpack.c.b16 %v1418, %v1417
    %v1455 = vpack.c.b16 %v1420, %v1419
    %v1456 = vpack.c.b16 %v1422, %v1421
    %v1457 = vpack.c.b16 %v1424, %v1423
    %v1458 = vpack.c.b16 %v1426, %v1425
    %v1459 = vpack.c.b16 %v1428, %v1427
    %v1460 = vpack.c.b16 %v1430, %v1429
    %v1461 = vpack.c.b16 %v1432, %v1431
    %v1462 = vpack.c.b16 %v1434, %v1433
    %v1463 = vpack.c.b16 %v1436, %v1435
    %v1464 = vpack.c.b16 %v1438, %v1437
    %v1465 = vpack.c.b16 %v1440, %v1439
    %v1466 = vpack.c.b16 %v1442, %v1441
    %1491 = vmatprep.subr.bf16.mxu0 0
    %1492 = vmatpush1.bf16.msra.mxu0 %v1450
    %1493 = vmatprep.subr.bf16.mxu0 0
    %1494 = vmatpush1.bf16.msra.mxu0 %v1449
    %1495 = vmatprep.subr.bf16.mxu0 0
    %1496 = vmatpush1.bf16.msra.mxu0 %v1448
    %1497 = vmatprep.subr.bf16.mxu0 0
    %1498 = vmatpush1.bf16.msra.mxu0 %v1447
    %1499 = vmatprep.subr.bf16.mxu0 0
    %1500 = vmatpush1.bf16.msra.mxu0 %v1446
    %1501 = vmatprep.subr.bf16.mxu0 0
    %1502 = vmatpush1.bf16.msra.mxu0 %v1445
    %1503 = vmatprep.subr.bf16.mxu0 0
    %1504 = vmatpush1.bf16.msra.mxu0 %v1444
    %1505 = vmatprep.subr.bf16.mxu0 0
    %1506 = vmatpush1.bf16.msra.mxu0 %v1443
    %1507 = vmatprep.subr.bf16.mxu0 0
    %1508 = vmatpush2.bf16.msra.mxu0 %v1458
    %1509 = vmatprep.subr.bf16.mxu0 0
    %1510 = vmatpush2.bf16.msra.mxu0 %v1457
    %1511 = vmatprep.subr.bf16.mxu0 0
    %1512 = vmatpush2.bf16.msra.mxu0 %v1456
    %1513 = vmatprep.subr.bf16.mxu0 0
    %1514 = vmatpush2.bf16.msra.mxu0 %v1455
    %1515 = vmatprep.subr.bf16.mxu0 0
    %1516 = vmatpush2.bf16.msra.mxu0 %v1454
    %1517 = vmatprep.subr.bf16.mxu0 0
    %1518 = vmatpush2.bf16.msra.mxu0 %v1453
    %1519 = vmatprep.subr.bf16.mxu0 0
    %1520 = vmatpush2.bf16.msra.mxu0 %v1452
    %1521 = vmatprep.subr.bf16.mxu0 0
    %1522 = vmatpush2.bf16.msra.mxu0 %v1451
    %1523 = vmatprep.mubr.bf16.mxu0 %v1290
    %1524 = vmatmul.mubr.bf16.gmra.mxu0 %v1289
    %v1525 = vpop.f32.mrf.mxu0
    %v1526 = vadd.f32 %v1345, %v1525
    %v1527 = vpop.f32.mrf.mxu0
    %v1528 = vpop.f32.mrf.mxu0
    %v1529 = vpop.f32.mrf.mxu0
    %1530 = vdwg.mxu0
    %1531 = vmatprep.subr.bf16.mxu0 0
    %1532 = vmatpush1.bf16.msra.mxu0 %v1466
    %1533 = vmatprep.subr.bf16.mxu0 0
    %1534 = vmatpush1.bf16.msra.mxu0 %v1465
    %1535 = vmatprep.subr.bf16.mxu0 0
    %1536 = vmatpush1.bf16.msra.mxu0 %v1464
    %1537 = vmatprep.subr.bf16.mxu0 0
    %1538 = vmatpush1.bf16.msra.mxu0 %v1463
    %1539 = vmatprep.subr.bf16.mxu0 0
    %1540 = vmatpush1.bf16.msra.mxu0 %v1462
    %1541 = vmatprep.subr.bf16.mxu0 0
    %1542 = vmatpush1.bf16.msra.mxu0 %v1461
    %1543 = vmatprep.subr.bf16.mxu0 0
    %1544 = vmatpush1.bf16.msra.mxu0 %v1460
    %1545 = vmatprep.subr.bf16.mxu0 0
    %1546 = vmatpush1.bf16.msra.mxu0 %v1459
    %1547 = vmatprep.subr.bf16.mxu0 0
    %1548 = vmatpush2.bf16.msra.mxu0 0
    %1549 = vmatprep.subr.bf16.mxu0 0
    %1550 = vmatpush2.bf16.msra.mxu0 0
    %1551 = vmatprep.subr.bf16.mxu0 0
    %1552 = vmatpush2.bf16.msra.mxu0 0
    %1553 = vmatprep.subr.bf16.mxu0 0
    %1554 = vmatpush2.bf16.msra.mxu0 0
    %1555 = vmatprep.subr.bf16.mxu0 0
    %1556 = vmatpush2.bf16.msra.mxu0 0
    %1557 = vmatprep.subr.bf16.mxu0 0
    %1558 = vmatpush2.bf16.msra.mxu0 0
    %1559 = vmatprep.subr.bf16.mxu0 0
    %1560 = vmatpush2.bf16.msra.mxu0 0
    %1561 = vmatprep.subr.bf16.mxu0 0
    %1562 = vmatpush2.bf16.msra.mxu0 0
    %1563 = vmatprep.mubr.bf16.mxu0 0
    %1564 = vmatmul.mubr.bf16.gmra.mxu0 %v1291
    %v1565 = vpop.f32.mrf.mxu0
    %v1566 = vadd.f32 %v1526, %v1565
    %v1567 = vpop.f32.mrf.mxu0
    %v1568 = vpop.f32.mrf.mxu0
    %v1569 = vpop.f32.mrf.mxu0
    %1570 = vdwg.mxu0
    %v1571 = vtanh.pop %v1566
    %1572 = vst [vmem:[#allocation13] sm:$0xff] %v1571
    // Predicated region
    $region54: #{tpu_custom_call.1} parent=1 // pred_check
      _
    $region55: #{tpu_custom_call.1} parent=1 // pred_check_branch
      %1574 = sbr.rel (0) target = $region57
    $region56: #{tpu_custom_call.1} parent=1 // pred_region
      %s1576 = ssub.s32 128, 128
      %1577 = vsyncadd [#allocation4], %s1576
      %s1579 = sshll.u32 [#allocation13], 4
      %s1580 = int_to_ptr.vmem [resolvable:$true] %s1579
      %1582 = dma.vmem_to_hbm [thread:$0]  %s1580, 128, %s7, [#allocation4]
    $region57: #{tpu_custom_call.1} parent=1 // pred_fallthru
      _
    // Predicated region
    $region58: #{tpu_custom_call.1} parent=1 // pred_check
      _
    $region59: #{tpu_custom_call.1} parent=1 // pred_check_branch
      %1584 = sbr.rel (0) target = $region61
    $region60: #{tpu_custom_call.1} parent=1 // pred_region
      %1585 = dma.done [#allocation4], 128
    $region61: #{tpu_custom_call.1} parent=1 // pred_fallthru
      _
    %1586 = vsyncpa [#allocation3], 1
    %1587 = vsyncpa [#allocation6], 1
    %1588 = vsyncpa [#allocation9], 1
    %1589 = vsyncpa [#allocation12], 1
    %1590 = vsyncpa [#allocation4], 1

</llo_original>
